<compile_context>
chip_gen: v6e
topology: v6e:2x2x1
jax: 0.10.0
libtpu: 0.0.40
codegen_flags: <defaults>
</compile_context>

<pallas_src>
import jax
import jax.numpy as jnp
from jax.experimental import pallas as pl
from jax.experimental.pallas import tpu as pltpu


def gmf_kernel(u_idx_ref, i_idx_ref,      # (1, TB) int32 id tiles (per grid step)
               u_tab_ref, i_tab_ref,      # (D, n_users) / (D, n_items) f32, VMEM-resident
               w_ref, b_ref,              # (D, 1) weight column, (1, 1) bias
               out_ref):                  # (1, TB) f32 lane-dense output tile
    u_idx = u_idx_ref[...]                # (1, TB) int32
    i_idx = i_idx_ref[...]                # (1, TB) int32

    D, n_users = u_tab_ref.shape
    _, n_items = i_tab_ref.shape
    tb = u_idx.shape[1]

    # Exact one-hot gather via MXU: onehot (N, TB) with 0/1 entries, so
    # table @ onehot reproduces the gathered rows exactly (HIGHEST precision).
    u_onehot = (jax.lax.broadcasted_iota(jnp.int32, (n_users, tb), 0)
                == u_idx).astype(jnp.float32)                       # (n_users, TB)
    i_onehot = (jax.lax.broadcasted_iota(jnp.int32, (n_items, tb), 0)
                == i_idx).astype(jnp.float32)                       # (n_items, TB)

    u = jnp.dot(u_tab_ref[...], u_onehot,
                preferred_element_type=jnp.float32,
                precision=jax.lax.Precision.HIGHEST)                # (D, TB)
    v = jnp.dot(i_tab_ref[...], i_onehot,
                preferred_element_type=jnp.float32,
                precision=jax.lax.Precision.HIGHEST)                # (D, TB)

    # GMF interaction + Linear(D -> 1), kept on the VPU: elementwise product,
    # weight broadcast along lanes, then a sublane (axis=0) reduction that
    # leaves the result lane-dense as (1, TB).
    weighted = (u * v) * w_ref[...]                                 # (D, TB)
    out_ref[...] = jnp.sum(weighted, axis=0, keepdims=True) + b_ref[...]


def gmf_forward(users, items, user_table, item_table, lin_w, lin_b, *, tile_b=128):
    """users, items: (B,) integer ids. Returns (B,) float32.

    tile_b must be a multiple of 128 (lane-dense output tiles); bump to
    512/1024 for large batches.
    """
    B = users.shape[0]
    n_users, D = user_table.shape
    n_items, _ = item_table.shape

    users = users.astype(jnp.int32)
    items = items.astype(jnp.int32)

    num_tiles = pl.cdiv(B, tile_b)
    b_pad = num_tiles * tile_b
    if b_pad != B:
        users = jnp.pad(users, (0, b_pad - B))   # pad with valid id 0; sliced off below
        items = jnp.pad(items, (0, b_pad - B))
    users2d = users.reshape(num_tiles, tile_b)
    items2d = items.reshape(num_tiles, tile_b)

    # Wrapper-side layout plumbing only (no compute hoisting): transpose so the
    # batch lands on the 128-lane axis inside the kernel.
    u_tab_t = user_table.astype(jnp.float32).T          # (D, n_users)
    i_tab_t = item_table.astype(jnp.float32).T          # (D, n_items)
    w_col = lin_w.astype(jnp.float32).reshape(1, D).T   # (D, 1)
    b2d = lin_b.astype(jnp.float32).reshape(1, 1)       # (1, 1)

    out = pl.pallas_call(
        gmf_kernel,
        out_shape=jax.ShapeDtypeStruct((num_tiles, tile_b), jnp.float32),
        grid=(num_tiles,),
        in_specs=[
            # Per-tile id slabs (streamed per grid step).
            pl.BlockSpec((1, tile_b), lambda g: (g, 0)),
            pl.BlockSpec((1, tile_b), lambda g: (g, 0)),
            # Small tables + linear params: full, untiled, VMEM-resident.
            pl.BlockSpec(memory_space=pltpu.MemorySpace.VMEM),
            pl.BlockSpec(memory_space=pltpu.MemorySpace.VMEM),
            pl.BlockSpec(memory_space=pltpu.MemorySpace.VMEM),
            pl.BlockSpec(memory_space=pltpu.MemorySpace.VMEM),
        ],
        out_specs=pl.BlockSpec((1, tile_b), lambda g: (g, 0)),
        compiler_params=pltpu.CompilerParams(
            dimension_semantics=("parallel",)),   # batch tiles are independent
    )(users2d, items2d, u_tab_t, i_tab_t, w_col, b2d)

    # torch .squeeze(): (B,) for B > 1. (For B == 1 torch returns a 0-d scalar;
    # we keep a 1-element vector here.)
    return out.reshape(b_pad)[:B]


def init_gmf_params(key, n_users, n_items, embedding_dim):
    """Deterministic init matching GMF.init_weight()."""
    k_u, k_i, k_w = jax.random.split(key, 3)
    user_table = 0.01 * jax.random.normal(k_u, (n_users, embedding_dim), jnp.float32)
    item_table = 0.01 * jax.random.normal(k_i, (n_items, embedding_dim), jnp.float32)
    # xavier_uniform_ for Linear(embedding_dim, 1): bound = sqrt(6/(fan_in+fan_out))
    bound = (6.0 / (embedding_dim + 1)) ** 0.5
    lin_w = jax.random.uniform(k_w, (1, embedding_dim), jnp.float32, -bound, bound)
    lin_b = jnp.zeros((1,), jnp.float32)
    return user_table, item_table, lin_w, lin_b


if __name__ == "__main__":
    n_users, n_items, embedding_dim = 64, 128, 32
    batch = 8

    key = jax.random.PRNGKey(0)
    user_table, item_table, lin_w, lin_b = init_gmf_params(
        key, n_users, n_items, embedding_dim)

    k_users, k_items = jax.random.split(jax.random.PRNGKey(1))
    users = jax.random.randint(k_users, (batch,), 0, n_users, dtype=jnp.int32)
    items = jax.random.randint(k_items, (batch,), 0, n_items, dtype=jnp.int32)

    out = gmf_forward(users, items, user_table, item_table, lin_w, lin_b)
    out = jax.block_until_ready(out)

    # Pure-JAX reference check of the forward pass (elementwise f32 reduction).
    u = user_table[users]
    v = item_table[items]
    ref = jnp.sum(u * v * lin_w[0][None, :], axis=-1) + lin_b[0]
    assert out.shape == (batch,)
    assert jnp.allclose(out, ref, atol=1e-5, rtol=1e-5)

    print("KERNEL_OK")
</pallas_src>

<mosaic_0001>
module attributes {stable_mosaic.version = 11 : i64} {
  func.func @gmf_kernel(%arg0: i32, %arg1: memref<1x128xi32, #tpu.memory_space<vmem>>, %arg2: memref<1x128xi32, #tpu.memory_space<vmem>>, %arg3: memref<32x64xf32, #tpu.memory_space<vmem>>, %arg4: memref<32x128xf32, #tpu.memory_space<vmem>>, %arg5: memref<32x1xf32, #tpu.memory_space<vmem>>, %arg6: memref<1x1xf32, #tpu.memory_space<vmem>>, %arg7: memref<1x128xf32, #tpu.memory_space<vmem>>) attributes {dimension_semantics = [#tpu.dimension_semantics<parallel>], iteration_bounds = array<i64: 1>, scalar_prefetch = 0 : i64, scratch_operands = 0 : i64, tpu.core_type = #tpu.core_type<tc>, window_params = [{transform_indices = @transform_0, window_bounds = array<i64: 1, 128>}, {transform_indices = @transform_1, window_bounds = array<i64: 1, 128>}, {pipeline_mode = #tpu.pipeline_mode<synchronous>, transform_indices = @transform_2, window_bounds = array<i64: 32, 64>}, {pipeline_mode = #tpu.pipeline_mode<synchronous>, transform_indices = @transform_3, window_bounds = array<i64: 32, 128>}, {pipeline_mode = #tpu.pipeline_mode<synchronous>, transform_indices = @transform_4, window_bounds = array<i64: 32, 1>}, {pipeline_mode = #tpu.pipeline_mode<synchronous>, transform_indices = @transform_5, window_bounds = array<i64: 1, 1>}, {transform_indices = @transform_6, window_bounds = array<i64: 1, 128>}]} {
    %c0 = arith.constant 0 : index
    %c0_0 = arith.constant 0 : index
    %0 = vector.load %arg1[%c0, %c0_0] : memref<1x128xi32, #tpu.memory_space<vmem>>, vector<1x128xi32>
    %c0_1 = arith.constant 0 : index
    %c0_2 = arith.constant 0 : index
    %1 = vector.load %arg2[%c0_1, %c0_2] : memref<1x128xi32, #tpu.memory_space<vmem>>, vector<1x128xi32>
    %2 = tpu.iota {dimensions = array<i32: 0>} : vector<64x128xi32>
    %3 = vector.broadcast %0 : vector<1x128xi32> to vector<64x128xi32>
    %4 = arith.cmpi eq, %2, %3 : vector<64x128xi32>
    %5 = arith.extui %4 : vector<64x128xi1> to vector<64x128xi32>
    %6 = arith.sitofp %5 : vector<64x128xi32> to vector<64x128xf32>
    %7 = tpu.iota {dimensions = array<i32: 0>} : vector<128x128xi32>
    %8 = vector.broadcast %1 : vector<1x128xi32> to vector<128x128xi32>
    %9 = arith.cmpi eq, %7, %8 : vector<128x128xi32>
    %10 = arith.extui %9 : vector<128x128xi1> to vector<128x128xi32>
    %11 = arith.sitofp %10 : vector<128x128xi32> to vector<128x128xf32>
    %c0_3 = arith.constant 0 : index
    %c0_4 = arith.constant 0 : index
    %12 = vector.load %arg3[%c0_3, %c0_4] : memref<32x64xf32, #tpu.memory_space<vmem>>, vector<32x64xf32>
    %cst = arith.constant dense<0.000000e+00> : vector<32x128xf32>
    %13 = tpu.matmul %12, %6, %cst {dimension_numbers = #tpu.dot_dimension_numbers<[1], [0], [0], [1], [0, 0, 1, 1], [], []>, precision = #tpu.contract_precision<fp32>} : vector<32x64xf32>, vector<64x128xf32>, vector<32x128xf32> -> vector<32x128xf32>
    %c0_5 = arith.constant 0 : index
    %c0_6 = arith.constant 0 : index
    %14 = vector.load %arg4[%c0_5, %c0_6] : memref<32x128xf32, #tpu.memory_space<vmem>>, vector<32x128xf32>
    %cst_7 = arith.constant dense<0.000000e+00> : vector<32x128xf32>
    %15 = tpu.matmul %14, %11, %cst_7 {dimension_numbers = #tpu.dot_dimension_numbers<[1], [0], [0], [1], [0, 0, 1, 1], [], []>, precision = #tpu.contract_precision<fp32>} : vector<32x128xf32>, vector<128x128xf32>, vector<32x128xf32> -> vector<32x128xf32>
    %16 = arith.mulf %13, %15 : vector<32x128xf32>
    %c0_8 = arith.constant 0 : index
    %c0_9 = arith.constant 0 : index
    %17 = vector.load %arg5[%c0_8, %c0_9] : memref<32x1xf32, #tpu.memory_space<vmem>>, vector<32x1xf32>
    %18 = vector.broadcast %17 : vector<32x1xf32> to vector<32x128xf32>
    %19 = arith.mulf %16, %18 : vector<32x128xf32>
    %cst_10 = arith.constant dense<0.000000e+00> : vector<128xf32>
    %20 = vector.multi_reduction <add>, %19, %cst_10 [0] : vector<32x128xf32> to vector<128xf32>
    %21 = vector.shape_cast %20 : vector<128xf32> to vector<1x128xf32>
    %c0_11 = arith.constant 0 : index
    %c0_12 = arith.constant 0 : index
    %22 = vector.load %arg6[%c0_11, %c0_12] : memref<1x1xf32, #tpu.memory_space<vmem>>, vector<1x1xf32>
    %23 = vector.broadcast %22 : vector<1x1xf32> to vector<1x128xf32>
    %24 = arith.addf %21, %23 : vector<1x128xf32>
    %c0_13 = arith.constant 0 : index
    %c0_14 = arith.constant 0 : index
    %25 = vector.load %arg7[%c0_13, %c0_14] : memref<1x128xf32, #tpu.memory_space<vmem>>, vector<1x128xf32>
    tpu.vector_store %arg7[%c0_13, %c0_14], %24 {strides = array<i32>} : memref<1x128xf32, #tpu.memory_space<vmem>>, vector<1x128xf32>,
    return
  }
  func.func @transform_0(%arg0: i32) -> (i32, i32) {
    %c0_i32 = arith.constant 0 : i32
    %c0_i32_0 = arith.constant 0 : i32
    return %arg0, %c0_i32 : i32, i32
  }
  func.func @transform_1(%arg0: i32) -> (i32, i32) {
    %c0_i32 = arith.constant 0 : i32
    %c0_i32_0 = arith.constant 0 : i32
    return %arg0, %c0_i32 : i32, i32
  }
  func.func @transform_2(%arg0: i32) -> (i32, i32) {
    %c0_i32 = arith.constant 0 : i32
    %c0_i32_0 = arith.constant 0 : i32
    %c0_i32_1 = arith.constant 0 : i32
    return %c0_i32, %c0_i32_0 : i32, i32
  }
  func.func @transform_3(%arg0: i32) -> (i32, i32) {
    %c0_i32 = arith.constant 0 : i32
    %c0_i32_0 = arith.constant 0 : i32
    %c0_i32_1 = arith.constant 0 : i32
    return %c0_i32, %c0_i32_0 : i32, i32
  }
  func.func @transform_4(%arg0: i32) -> (i32, i32) {
    %c0_i32 = arith.constant 0 : i32
    %c0_i32_0 = arith.constant 0 : i32
    %c0_i32_1 = arith.constant 0 : i32
    return %c0_i32, %c0_i32_0 : i32, i32
  }
  func.func @transform_5(%arg0: i32) -> (i32, i32) {
    %c0_i32 = arith.constant 0 : i32
    %c0_i32_0 = arith.constant 0 : i32
    %c0_i32_1 = arith.constant 0 : i32
    return %c0_i32, %c0_i32_0 : i32, i32
  }
  func.func @transform_6(%arg0: i32) -> (i32, i32) {
    %c0_i32 = arith.constant 0 : i32
    %c0_i32_0 = arith.constant 0 : i32
    return %arg0, %c0_i32 : i32, i32
  }
}

</mosaic_0001>

<llo_original>
// kernel: tpu_custom_call.1
$region0: #{tpu_custom_call.1}
  #allocation0 [shape = 'u32[]', space=smem, size = 0x4, offset = 0x4, fixed_abs, tag = 'smem constant byte address 0x4 - core index']
  #allocation1 [shape = 'u32[144,128]{1,0:T(1,128)}', space=vmem, size = 0x12000, scoped, tag = 'internal scratch']
  #allocation2 [shape = 'f32[1,1]{1,0:T(1,128)S(1)}', space=vmem, size = 0x200, scoped, tag = 'scoped memory for tpu_custom_call.1']
  %s0 = inlined_call_operand.vmem [shape: s32[1,128], index: 0, kind: input, shape index: {}]
  %s1 = inlined_call_operand.vmem [shape: s32[1,128], index: 1, kind: input, shape index: {}]
  %s2 = inlined_call_operand.vmem [shape: f32[32,64], index: 2, kind: input, shape index: {}]
  %s3 = inlined_call_operand.hbm [shape: f32[32,128], index: 3, kind: input, shape index: {}]
  %s4 = inlined_call_operand.vmem [shape: f32[32,1], index: 4, kind: input, shape index: {}]
  %s5 = inlined_call_operand.<no memory space> [shape: f32[1,1], index: 5, kind: input, shape index: {}]
  %s6 = inlined_call_operand.hbm [shape: f32[1,128], index: 6, kind: output, shape index: {}]
  %s7 = sld [smem:[#allocation0]]
  $region38: #{tpu_custom_call.1} parent=0
    _
  %s9 = ssub.s32 1, %s7
  %s10 = scalar_select 0, %s9, %s7
  %v11 = vstv %s5
  %12 = vst [vmem:[#allocation2] sm:$0x1] %v11
  $region1: #{tpu_custom_call.1} parent=0
    #allocation3 [shape = 'u8[16384]{0}', space=vmem, size = 0x4000, scoped, tag = 'input window, operand 3, single buffered']
    #allocation4 [shape = 's32[1]{0}', space=sflag, size = 0x4, scoped, tag = 'scoped memory for tpu_custom_call.1']
    #allocation5 [shape = 's32[1]{0}', space=sflag, size = 0x4, scoped, tag = 'scoped memory for tpu_custom_call.1']
    #allocation6 [shape = 'u8[512]{0}', space=vmem, size = 0x400, scoped, tag = 'output window, operand 0, single buffered']
    %13 = vsyncpa [#allocation4], 0
    %14 = vsyncpa [#allocation5], 0
    // Predicated region
    $region2: #{tpu_custom_call.1} parent=1 // pred_check
      _
    $region3: #{tpu_custom_call.1} parent=1 // pred_check_branch
      %16 = sbr.rel (0) target = $region5
    $region4: #{tpu_custom_call.1} parent=1 // pred_region
      _
    $region5: #{tpu_custom_call.1} parent=1 // pred_fallthru
      _
    // Predicated region
    $region6: #{tpu_custom_call.1} parent=1 // pred_check
      _
    $region7: #{tpu_custom_call.1} parent=1 // pred_check_branch
      %18 = sbr.rel (0) target = $region9
    $region8: #{tpu_custom_call.1} parent=1 // pred_region
      _
    $region9: #{tpu_custom_call.1} parent=1 // pred_fallthru
      _
    // Predicated region
    $region10: #{tpu_custom_call.1} parent=1 // pred_check
      _
    $region11: #{tpu_custom_call.1} parent=1 // pred_check_branch
      %20 = sbr.rel (0) target = $region13
    $region12: #{tpu_custom_call.1} parent=1 // pred_region
      _
    $region13: #{tpu_custom_call.1} parent=1 // pred_fallthru
      _
    // Predicated region
    $region14: #{tpu_custom_call.1} parent=1 // pred_check
      _
    $region15: #{tpu_custom_call.1} parent=1 // pred_check_branch
      %22 = sbr.rel (0) target = $region17
    $region16: #{tpu_custom_call.1} parent=1 // pred_region
      %s24 = ssub.s32 512, 512
      %25 = vsyncadd [#allocation4], %s24
      %s26 = sshll.u32 [#allocation3], 4
      %s27 = int_to_ptr.vmem [resolvable:$true] %s26
      %32 = dma.hbm_to_vmem [thread:$0]  %s3, 512, %s27, [#allocation4], 128, 128, 8
    $region17: #{tpu_custom_call.1} parent=1 // pred_fallthru
      _
    // Predicated region
    $region18: #{tpu_custom_call.1} parent=1 // pred_check
      _
    $region19: #{tpu_custom_call.1} parent=1 // pred_check_branch
      %34 = sbr.rel (0) target = $region21
    $region20: #{tpu_custom_call.1} parent=1 // pred_region
      _
    $region21: #{tpu_custom_call.1} parent=1 // pred_fallthru
      _
    // Predicated region
    $region22: #{tpu_custom_call.1} parent=1 // pred_check
      _
    $region23: #{tpu_custom_call.1} parent=1 // pred_check_branch
      %36 = sbr.rel (0) target = $region25
    $region24: #{tpu_custom_call.1} parent=1 // pred_region
      _
    $region25: #{tpu_custom_call.1} parent=1 // pred_fallthru
      _
    // Predicated region
    $region26: #{tpu_custom_call.1} parent=1 // pred_check
      _
    $region27: #{tpu_custom_call.1} parent=1 // pred_check_branch
      %38 = sbr.rel (0) target = $region29
    $region28: #{tpu_custom_call.1} parent=1 // pred_region
      %39 = dma.done [#allocation4], 512
    $region29: #{tpu_custom_call.1} parent=1 // pred_fallthru
      _
    %v40 = vld [vmem:[%s0] sm:$0x1]
    %v41 = vld [vmem:[%s1] sm:$0x1]
    %v42 = vlaneseq
    %v43 = vshrl.u32 %v42, 7
    %v44 = vadd.s32 %v43, 8
    %v45 = vadd.s32 %v43, 16
    %v46 = vadd.s32 %v43, 24
    %v47 = vadd.s32 %v43, 32
    %v48 = vadd.s32 %v43, 40
    %v49 = vadd.s32 %v43, 48
    %v50 = vadd.s32 %v43, 56
    %v51 = vlaneseq
    %v52 = vshrl.u32 %v51, 7
    %v53 = vsub.s32 0, %v52
    %v54 = vrot.slane %v40, %v53
    %vm55 = vcmp.eq.s32.totalorder %v43, %v54
    %vm56 = vcmp.eq.s32.totalorder %v44, %v54
    %vm57 = vcmp.eq.s32.totalorder %v45, %v54
    %vm58 = vcmp.eq.s32.totalorder %v46, %v54
    %vm59 = vcmp.eq.s32.totalorder %v47, %v54
    %vm60 = vcmp.eq.s32.totalorder %v48, %v54
    %vm61 = vcmp.eq.s32.totalorder %v49, %v54
    %vm62 = vcmp.eq.s32.totalorder %v50, %v54
    %v63 = vsel %vm55, 1, 0
    %v64 = vsel %vm56, 1, 0
    %v65 = vsel %vm57, 1, 0
    %v66 = vsel %vm58, 1, 0
    %v67 = vsel %vm59, 1, 0
    %v68 = vsel %vm60, 1, 0
    %v69 = vsel %vm61, 1, 0
    %v70 = vsel %vm62, 1, 0
    %v71 = vcvt.s32.f32 %v63
    %v72 = vcvt.s32.f32 %v64
    %v73 = vcvt.s32.f32 %v65
    %v74 = vcvt.s32.f32 %v66
    %v75 = vcvt.s32.f32 %v67
    %v76 = vcvt.s32.f32 %v68
    %v77 = vcvt.s32.f32 %v69
    %v78 = vcvt.s32.f32 %v70
    %v79 = vadd.s32 %v43, 64
    %v80 = vadd.s32 %v43, 72
    %v81 = vadd.s32 %v43, 80
    %v82 = vadd.s32 %v43, 88
    %v83 = vadd.s32 %v43, 96
    %v84 = vadd.s32 %v43, 104
    %v85 = vadd.s32 %v43, 112
    %v86 = vadd.s32 %v43, 120
    %v87 = vlaneseq
    %v88 = vshrl.u32 %v87, 7
    %v89 = vsub.s32 0, %v88
    %v90 = vrot.slane %v41, %v89
    %vm91 = vcmp.eq.s32.totalorder %v43, %v90
    %vm92 = vcmp.eq.s32.totalorder %v44, %v90
    %vm93 = vcmp.eq.s32.totalorder %v45, %v90
    %vm94 = vcmp.eq.s32.totalorder %v46, %v90
    %vm95 = vcmp.eq.s32.totalorder %v47, %v90
    %vm96 = vcmp.eq.s32.totalorder %v48, %v90
    %vm97 = vcmp.eq.s32.totalorder %v49, %v90
    %vm98 = vcmp.eq.s32.totalorder %v50, %v90
    %vm99 = vcmp.eq.s32.totalorder %v79, %v90
    %vm100 = vcmp.eq.s32.totalorder %v80, %v90
    %vm101 = vcmp.eq.s32.totalorder %v81, %v90
    %vm102 = vcmp.eq.s32.totalorder %v82, %v90
    %vm103 = vcmp.eq.s32.totalorder %v83, %v90
    %vm104 = vcmp.eq.s32.totalorder %v84, %v90
    %vm105 = vcmp.eq.s32.totalorder %v85, %v90
    %vm106 = vcmp.eq.s32.totalorder %v86, %v90
    %v107 = vsel %vm91, 1, 0
    %v108 = vsel %vm92, 1, 0
    %v109 = vsel %vm93, 1, 0
    %v110 = vsel %vm94, 1, 0
    %v111 = vsel %vm95, 1, 0
    %v112 = vsel %vm96, 1, 0
    %v113 = vsel %vm97, 1, 0
    %v114 = vsel %vm98, 1, 0
    %v115 = vsel %vm99, 1, 0
    %v116 = vsel %vm100, 1, 0
    %v117 = vsel %vm101, 1, 0
    %v118 = vsel %vm102, 1, 0
    %v119 = vsel %vm103, 1, 0
    %v120 = vsel %vm104, 1, 0
    %v121 = vsel %vm105, 1, 0
    %v122 = vsel %vm106, 1, 0
    %v123 = vcvt.s32.f32 %v107
    %v124 = vcvt.s32.f32 %v108
    %v125 = vcvt.s32.f32 %v109
    %v126 = vcvt.s32.f32 %v110
    %v127 = vcvt.s32.f32 %v111
    %v128 = vcvt.s32.f32 %v112
    %v129 = vcvt.s32.f32 %v113
    %v130 = vcvt.s32.f32 %v114
    %v131 = vcvt.s32.f32 %v115
    %v132 = vcvt.s32.f32 %v116
    %v133 = vcvt.s32.f32 %v117
    %v134 = vcvt.s32.f32 %v118
    %v135 = vcvt.s32.f32 %v119
    %v136 = vcvt.s32.f32 %v120
    %v137 = vcvt.s32.f32 %v121
    %v138 = vcvt.s32.f32 %v122
    %v139 = vld [vmem:[%s2] sm:$0xff]
    %v140 = vld [vmem:[%s2 + $0x8] sm:$0xff]
    %v141 = vld [vmem:[%s2 + $0x10] sm:$0xff]
    %v142 = vld [vmem:[%s2 + $0x18] sm:$0xff]
    %vm143 = vcmask 523264
    %v145 = vsel %vm143, %v139, 0
    %v148 = vsel %vm143, %v140, 0
    %v151 = vsel %vm143, %v141, 0
    %v154 = vsel %vm143, %v142, 0
    %156 = vmatprep.subr.mxu0 0.0
    %157 = vmatpush1.msra.mxu0 0.0
    %158 = vmatprep.subr.mxu0 0.0
    %159 = vmatpush1.msra.mxu0 0.0
    %160 = vmatprep.subr.mxu0 0.0
    %161 = vmatpush1.msra.mxu0 0.0
    %162 = vmatprep.subr.mxu0 0.0
    %163 = vmatpush1.msra.mxu0 0.0
    %164 = vmatprep.subr.mxu0 0.0
    %165 = vmatpush1.msra.mxu0 0.0
    %166 = vmatprep.subr.mxu0 0.0
    %167 = vmatpush1.msra.mxu0 0.0
    %168 = vmatprep.subr.mxu0 0.0
    %169 = vmatpush1.msra.mxu0 0.0
    %170 = vmatprep.subr.mxu0 0.0
    %171 = vmatpush1.msra.mxu0 0.0
    %172 = vmatprep.subr.mxu0 0.0
    %v173 = vand.u32 %v78, 4294901760
    %174 = vmatpush1.msra.mxu0 %v173
    %175 = vmatprep.subr.mxu0 0.0
    %v176 = vand.u32 %v77, 4294901760
    %177 = vmatpush1.msra.mxu0 %v176
    %178 = vmatprep.subr.mxu0 0.0
    %v179 = vand.u32 %v76, 4294901760
    %180 = vmatpush1.msra.mxu0 %v179
    %181 = vmatprep.subr.mxu0 0.0
    %v182 = vand.u32 %v75, 4294901760
    %183 = vmatpush1.msra.mxu0 %v182
    %184 = vmatprep.subr.mxu0 0.0
    %v185 = vand.u32 %v74, 4294901760
    %186 = vmatpush1.msra.mxu0 %v185
    %187 = vmatprep.subr.mxu0 0.0
    %v188 = vand.u32 %v73, 4294901760
    %189 = vmatpush1.msra.mxu0 %v188
    %190 = vmatprep.subr.mxu0 0.0
    %v191 = vand.u32 %v72, 4294901760
    %192 = vmatpush1.msra.mxu0 %v191
    %193 = vmatprep.subr.mxu0 0.0
    %v194 = vand.u32 %v71, 4294901760
    %195 = vmatpush1.msra.mxu0 %v194
    %196 = vmatprep.subr.mxu0 0.0
    %197 = vmatpush2.msra.mxu0 0.0
    %198 = vmatprep.subr.mxu0 0.0
    %199 = vmatpush2.msra.mxu0 0.0
    %200 = vmatprep.subr.mxu0 0.0
    %201 = vmatpush2.msra.mxu0 0.0
    %202 = vmatprep.subr.mxu0 0.0
    %203 = vmatpush2.msra.mxu0 0.0
    %204 = vmatprep.subr.mxu0 0.0
    %205 = vmatpush2.msra.mxu0 0.0
    %206 = vmatprep.subr.mxu0 0.0
    %207 = vmatpush2.msra.mxu0 0.0
    %208 = vmatprep.subr.mxu0 0.0
    %209 = vmatpush2.msra.mxu0 0.0
    %210 = vmatprep.subr.mxu0 0.0
    %211 = vmatpush2.msra.mxu0 0.0
    %212 = vmatprep.subr.mxu0 0.0
    %213 = vmatpush2.msra.mxu0 0.0
    %214 = vmatprep.subr.mxu0 0.0
    %215 = vmatpush2.msra.mxu0 0.0
    %216 = vmatprep.subr.mxu0 0.0
    %217 = vmatpush2.msra.mxu0 0.0
    %218 = vmatprep.subr.mxu0 0.0
    %219 = vmatpush2.msra.mxu0 0.0
    %220 = vmatprep.subr.mxu0 0.0
    %221 = vmatpush2.msra.mxu0 0.0
    %222 = vmatprep.subr.mxu0 0.0
    %223 = vmatpush2.msra.mxu0 0.0
    %224 = vmatprep.subr.mxu0 0.0
    %225 = vmatpush2.msra.mxu0 0.0
    %226 = vmatprep.subr.mxu0 0.0
    %227 = vmatpush2.msra.mxu0 0.0
    %228 = vmatprep.mubr.f32.mxu0 0.0
    %v229 = vand.u32 %v145, 4294901760
    %v230 = vsub.f32 %v145, %v229
    %v231 = vand.u32 %v230, 4294901760
    %v232 = vsub.f32 %v230, %v231
    %v233 = vand.u32 %v232, 4294901760
    %234 = vmatmul.mubr.f32.gmra.mxu0 %v233
    %v235 = vpop.f32.mrf.mxu0
    %v236 = vadd.f32 0.0, %v235
    %v237 = vpop.f32.mrf.mxu0
    %238 = vmatprep.mubr.f32.mxu0 0.0
    %v239 = vand.u32 %v148, 4294901760
    %v240 = vsub.f32 %v148, %v239
    %v241 = vand.u32 %v240, 4294901760
    %v242 = vsub.f32 %v240, %v241
    %v243 = vand.u32 %v242, 4294901760
    %244 = vmatmul.mubr.f32.gmra.mxu0 %v243
    %v245 = vpop.f32.mrf.mxu0
    %v246 = vadd.f32 0.0, %v245
    %v247 = vpop.f32.mrf.mxu0
    %248 = vmatprep.mubr.f32.mxu0 0.0
    %v249 = vand.u32 %v151, 4294901760
    %v250 = vsub.f32 %v151, %v249
    %v251 = vand.u32 %v250, 4294901760
    %v252 = vsub.f32 %v250, %v251
    %v253 = vand.u32 %v252, 4294901760
    %254 = vmatmul.mubr.f32.gmra.mxu0 %v253
    %v255 = vpop.f32.mrf.mxu0
    %v256 = vadd.f32 0.0, %v255
    %v257 = vpop.f32.mrf.mxu0
    %258 = vmatprep.mubr.f32.mxu0 0.0
    %v259 = vand.u32 %v154, 4294901760
    %v260 = vsub.f32 %v154, %v259
    %v261 = vand.u32 %v260, 4294901760
    %v262 = vsub.f32 %v260, %v261
    %v263 = vand.u32 %v262, 4294901760
    %264 = vmatmul.mubr.f32.gmra.mxu0 %v263
    %v265 = vpop.f32.mrf.mxu0
    %v266 = vadd.f32 0.0, %v265
    %v267 = vpop.f32.mrf.mxu0
    %268 = vdwg.mxu0
    %269 = vmatprep.subr.mxu0 0.0
    %270 = vmatpush1.msra.mxu0 0.0
    %271 = vmatprep.subr.mxu0 0.0
    %272 = vmatpush1.msra.mxu0 0.0
    %273 = vmatprep.subr.mxu0 0.0
    %274 = vmatpush1.msra.mxu0 0.0
    %275 = vmatprep.subr.mxu0 0.0
    %276 = vmatpush1.msra.mxu0 0.0
    %277 = vmatprep.subr.mxu0 0.0
    %278 = vmatpush1.msra.mxu0 0.0
    %279 = vmatprep.subr.mxu0 0.0
    %280 = vmatpush1.msra.mxu0 0.0
    %281 = vmatprep.subr.mxu0 0.0
    %282 = vmatpush1.msra.mxu0 0.0
    %283 = vmatprep.subr.mxu0 0.0
    %284 = vmatpush1.msra.mxu0 0.0
    %285 = vmatprep.subr.mxu0 0.0
    %v286 = vand.u32 %v78, 4294901760
    %v287 = vsub.f32 %v78, %v286
    %v288 = vand.u32 %v287, 4294901760
    %v289 = vsub.f32 %v287, %v288
    %v290 = vand.u32 %v289, 4294901760
    %291 = vmatpush1.msra.mxu0 %v290
    %292 = vmatprep.subr.mxu0 0.0
    %v293 = vand.u32 %v77, 4294901760
    %v294 = vsub.f32 %v77, %v293
    %v295 = vand.u32 %v294, 4294901760
    %v296 = vsub.f32 %v294, %v295
    %v297 = vand.u32 %v296, 4294901760
    %298 = vmatpush1.msra.mxu0 %v297
    %299 = vmatprep.subr.mxu0 0.0
    %v300 = vand.u32 %v76, 4294901760
    %v301 = vsub.f32 %v76, %v300
    %v302 = vand.u32 %v301, 4294901760
    %v303 = vsub.f32 %v301, %v302
    %v304 = vand.u32 %v303, 4294901760
    %305 = vmatpush1.msra.mxu0 %v304
    %306 = vmatprep.subr.mxu0 0.0
    %v307 = vand.u32 %v75, 4294901760
    %v308 = vsub.f32 %v75, %v307
    %v309 = vand.u32 %v308, 4294901760
    %v310 = vsub.f32 %v308, %v309
    %v311 = vand.u32 %v310, 4294901760
    %312 = vmatpush1.msra.mxu0 %v311
    %313 = vmatprep.subr.mxu0 0.0
    %v314 = vand.u32 %v74, 4294901760
    %v315 = vsub.f32 %v74, %v314
    %v316 = vand.u32 %v315, 4294901760
    %v317 = vsub.f32 %v315, %v316
    %v318 = vand.u32 %v317, 4294901760
    %319 = vmatpush1.msra.mxu0 %v318
    %320 = vmatprep.subr.mxu0 0.0
    %v321 = vand.u32 %v73, 4294901760
    %v322 = vsub.f32 %v73, %v321
    %v323 = vand.u32 %v322, 4294901760
    %v324 = vsub.f32 %v322, %v323
    %v325 = vand.u32 %v324, 4294901760
    %326 = vmatpush1.msra.mxu0 %v325
    %327 = vmatprep.subr.mxu0 0.0
    %v328 = vand.u32 %v72, 4294901760
    %v329 = vsub.f32 %v72, %v328
    %v330 = vand.u32 %v329, 4294901760
    %v331 = vsub.f32 %v329, %v330
    %v332 = vand.u32 %v331, 4294901760
    %333 = vmatpush1.msra.mxu0 %v332
    %334 = vmatprep.subr.mxu0 0.0
    %v335 = vand.u32 %v71, 4294901760
    %v336 = vsub.f32 %v71, %v335
    %v337 = vand.u32 %v336, 4294901760
    %v338 = vsub.f32 %v336, %v337
    %v339 = vand.u32 %v338, 4294901760
    %340 = vmatpush1.msra.mxu0 %v339
    %341 = vmatprep.subr.mxu0 0.0
    %342 = vmatpush2.msra.mxu0 0.0
    %343 = vmatprep.subr.mxu0 0.0
    %344 = vmatpush2.msra.mxu0 0.0
    %345 = vmatprep.subr.mxu0 0.0
    %346 = vmatpush2.msra.mxu0 0.0
    %347 = vmatprep.subr.mxu0 0.0
    %348 = vmatpush2.msra.mxu0 0.0
    %349 = vmatprep.subr.mxu0 0.0
    %350 = vmatpush2.msra.mxu0 0.0
    %351 = vmatprep.subr.mxu0 0.0
    %352 = vmatpush2.msra.mxu0 0.0
    %353 = vmatprep.subr.mxu0 0.0
    %354 = vmatpush2.msra.mxu0 0.0
    %355 = vmatprep.subr.mxu0 0.0
    %356 = vmatpush2.msra.mxu0 0.0
    %357 = vmatprep.subr.mxu0 0.0
    %358 = vmatpush2.msra.mxu0 0.0
    %359 = vmatprep.subr.mxu0 0.0
    %360 = vmatpush2.msra.mxu0 0.0
    %361 = vmatprep.subr.mxu0 0.0
    %362 = vmatpush2.msra.mxu0 0.0
    %363 = vmatprep.subr.mxu0 0.0
    %364 = vmatpush2.msra.mxu0 0.0
    %365 = vmatprep.subr.mxu0 0.0
    %366 = vmatpush2.msra.mxu0 0.0
    %367 = vmatprep.subr.mxu0 0.0
    %368 = vmatpush2.msra.mxu0 0.0
    %369 = vmatprep.subr.mxu0 0.0
    %370 = vmatpush2.msra.mxu0 0.0
    %371 = vmatprep.subr.mxu0 0.0
    %372 = vmatpush2.msra.mxu0 0.0
    %373 = vmatprep.mubr.f32.mxu0 0.0
    %v374 = vand.u32 %v145, 4294901760
    %375 = vmatmul.mubr.f32.gmra.mxu0 %v374
    %v376 = vpop.f32.mrf.mxu0
    %v377 = vadd.f32 %v236, %v376
    %v378 = vpop.f32.mrf.mxu0
    %379 = vmatprep.mubr.f32.mxu0 0.0
    %v380 = vand.u32 %v148, 4294901760
    %381 = vmatmul.mubr.f32.gmra.mxu0 %v380
    %v382 = vpop.f32.mrf.mxu0
    %v383 = vadd.f32 %v246, %v382
    %v384 = vpop.f32.mrf.mxu0
    %385 = vmatprep.mubr.f32.mxu0 0.0
    %v386 = vand.u32 %v151, 4294901760
    %387 = vmatmul.mubr.f32.gmra.mxu0 %v386
    %v388 = vpop.f32.mrf.mxu0
    %v389 = vadd.f32 %v256, %v388
    %v390 = vpop.f32.mrf.mxu0
    %391 = vmatprep.mubr.f32.mxu0 0.0
    %v392 = vand.u32 %v154, 4294901760
    %393 = vmatmul.mubr.f32.gmra.mxu0 %v392
    %v394 = vpop.f32.mrf.mxu0
    %v395 = vadd.f32 %v266, %v394
    %v396 = vpop.f32.mrf.mxu0
    %397 = vdwg.mxu0
    %398 = vmatprep.subr.mxu0 0.0
    %399 = vmatpush1.msra.mxu0 0.0
    %400 = vmatprep.subr.mxu0 0.0
    %401 = vmatpush1.msra.mxu0 0.0
    %402 = vmatprep.subr.mxu0 0.0
    %403 = vmatpush1.msra.mxu0 0.0
    %404 = vmatprep.subr.mxu0 0.0
    %405 = vmatpush1.msra.mxu0 0.0
    %406 = vmatprep.subr.mxu0 0.0
    %407 = vmatpush1.msra.mxu0 0.0
    %408 = vmatprep.subr.mxu0 0.0
    %409 = vmatpush1.msra.mxu0 0.0
    %410 = vmatprep.subr.mxu0 0.0
    %411 = vmatpush1.msra.mxu0 0.0
    %412 = vmatprep.subr.mxu0 0.0
    %413 = vmatpush1.msra.mxu0 0.0
    %414 = vmatprep.subr.mxu0 0.0
    %v415 = vand.u32 %v78, 4294901760
    %v416 = vsub.f32 %v78, %v415
    %417 = vmatpush1.msra.mxu0 %v416
    %418 = vmatprep.subr.mxu0 0.0
    %v419 = vand.u32 %v77, 4294901760
    %v420 = vsub.f32 %v77, %v419
    %421 = vmatpush1.msra.mxu0 %v420
    %422 = vmatprep.subr.mxu0 0.0
    %v423 = vand.u32 %v76, 4294901760
    %v424 = vsub.f32 %v76, %v423
    %425 = vmatpush1.msra.mxu0 %v424
    %426 = vmatprep.subr.mxu0 0.0
    %v427 = vand.u32 %v75, 4294901760
    %v428 = vsub.f32 %v75, %v427
    %429 = vmatpush1.msra.mxu0 %v428
    %430 = vmatprep.subr.mxu0 0.0
    %v431 = vand.u32 %v74, 4294901760
    %v432 = vsub.f32 %v74, %v431
    %433 = vmatpush1.msra.mxu0 %v432
    %434 = vmatprep.subr.mxu0 0.0
    %v435 = vand.u32 %v73, 4294901760
    %v436 = vsub.f32 %v73, %v435
    %437 = vmatpush1.msra.mxu0 %v436
    %438 = vmatprep.subr.mxu0 0.0
    %v439 = vand.u32 %v72, 4294901760
    %v440 = vsub.f32 %v72, %v439
    %441 = vmatpush1.msra.mxu0 %v440
    %442 = vmatprep.subr.mxu0 0.0
    %v443 = vand.u32 %v71, 4294901760
    %v444 = vsub.f32 %v71, %v443
    %445 = vmatpush1.msra.mxu0 %v444
    %446 = vmatprep.subr.mxu0 0.0
    %447 = vmatpush2.msra.mxu0 0.0
    %448 = vmatprep.subr.mxu0 0.0
    %449 = vmatpush2.msra.mxu0 0.0
    %450 = vmatprep.subr.mxu0 0.0
    %451 = vmatpush2.msra.mxu0 0.0
    %452 = vmatprep.subr.mxu0 0.0
    %453 = vmatpush2.msra.mxu0 0.0
    %454 = vmatprep.subr.mxu0 0.0
    %455 = vmatpush2.msra.mxu0 0.0
    %456 = vmatprep.subr.mxu0 0.0
    %457 = vmatpush2.msra.mxu0 0.0
    %458 = vmatprep.subr.mxu0 0.0
    %459 = vmatpush2.msra.mxu0 0.0
    %460 = vmatprep.subr.mxu0 0.0
    %461 = vmatpush2.msra.mxu0 0.0
    %462 = vmatprep.subr.mxu0 0.0
    %463 = vmatpush2.msra.mxu0 0.0
    %464 = vmatprep.subr.mxu0 0.0
    %465 = vmatpush2.msra.mxu0 0.0
    %466 = vmatprep.subr.mxu0 0.0
    %467 = vmatpush2.msra.mxu0 0.0
    %468 = vmatprep.subr.mxu0 0.0
    %469 = vmatpush2.msra.mxu0 0.0
    %470 = vmatprep.subr.mxu0 0.0
    %471 = vmatpush2.msra.mxu0 0.0
    %472 = vmatprep.subr.mxu0 0.0
    %473 = vmatpush2.msra.mxu0 0.0
    %474 = vmatprep.subr.mxu0 0.0
    %475 = vmatpush2.msra.mxu0 0.0
    %476 = vmatprep.subr.mxu0 0.0
    %477 = vmatpush2.msra.mxu0 0.0
    %478 = vmatprep.mubr.f32.mxu0 0.0
    %v479 = vand.u32 %v145, 4294901760
    %v480 = vsub.f32 %v145, %v479
    %481 = vmatmul.mubr.f32.gmra.mxu0 %v480
    %v482 = vpop.f32.mrf.mxu0
    %v483 = vadd.f32 %v377, %v482
    %v484 = vpop.f32.mrf.mxu0
    %485 = vmatprep.mubr.f32.mxu0 0.0
    %v486 = vand.u32 %v148, 4294901760
    %v487 = vsub.f32 %v148, %v486
    %488 = vmatmul.mubr.f32.gmra.mxu0 %v487
    %v489 = vpop.f32.mrf.mxu0
    %v490 = vadd.f32 %v383, %v489
    %v491 = vpop.f32.mrf.mxu0
    %492 = vmatprep.mubr.f32.mxu0 0.0
    %v493 = vand.u32 %v151, 4294901760
    %v494 = vsub.f32 %v151, %v493
    %495 = vmatmul.mubr.f32.gmra.mxu0 %v494
    %v496 = vpop.f32.mrf.mxu0
    %v497 = vadd.f32 %v389, %v496
    %v498 = vpop.f32.mrf.mxu0
    %499 = vmatprep.mubr.f32.mxu0 0.0
    %v500 = vand.u32 %v154, 4294901760
    %v501 = vsub.f32 %v154, %v500
    %502 = vmatmul.mubr.f32.gmra.mxu0 %v501
    %v503 = vpop.f32.mrf.mxu0
    %v504 = vadd.f32 %v395, %v503
    %v505 = vpop.f32.mrf.mxu0
    %506 = vdwg.mxu0
    %507 = vmatprep.subr.mxu0 0.0
    %508 = vmatpush1.msra.mxu0 0.0
    %509 = vmatprep.subr.mxu0 0.0
    %510 = vmatpush1.msra.mxu0 0.0
    %511 = vmatprep.subr.mxu0 0.0
    %512 = vmatpush1.msra.mxu0 0.0
    %513 = vmatprep.subr.mxu0 0.0
    %514 = vmatpush1.msra.mxu0 0.0
    %515 = vmatprep.subr.mxu0 0.0
    %516 = vmatpush1.msra.mxu0 0.0
    %517 = vmatprep.subr.mxu0 0.0
    %518 = vmatpush1.msra.mxu0 0.0
    %519 = vmatprep.subr.mxu0 0.0
    %520 = vmatpush1.msra.mxu0 0.0
    %521 = vmatprep.subr.mxu0 0.0
    %522 = vmatpush1.msra.mxu0 0.0
    %523 = vmatprep.subr.mxu0 0.0
    %v524 = vand.u32 %v78, 4294901760
    %525 = vmatpush1.msra.mxu0 %v524
    %526 = vmatprep.subr.mxu0 0.0
    %v527 = vand.u32 %v77, 4294901760
    %528 = vmatpush1.msra.mxu0 %v527
    %529 = vmatprep.subr.mxu0 0.0
    %v530 = vand.u32 %v76, 4294901760
    %531 = vmatpush1.msra.mxu0 %v530
    %532 = vmatprep.subr.mxu0 0.0
    %v533 = vand.u32 %v75, 4294901760
    %534 = vmatpush1.msra.mxu0 %v533
    %535 = vmatprep.subr.mxu0 0.0
    %v536 = vand.u32 %v74, 4294901760
    %537 = vmatpush1.msra.mxu0 %v536
    %538 = vmatprep.subr.mxu0 0.0
    %v539 = vand.u32 %v73, 4294901760
    %540 = vmatpush1.msra.mxu0 %v539
    %541 = vmatprep.subr.mxu0 0.0
    %v542 = vand.u32 %v72, 4294901760
    %543 = vmatpush1.msra.mxu0 %v542
    %544 = vmatprep.subr.mxu0 0.0
    %v545 = vand.u32 %v71, 4294901760
    %546 = vmatpush1.msra.mxu0 %v545
    %547 = vmatprep.subr.mxu0 0.0
    %548 = vmatpush2.msra.mxu0 0.0
    %549 = vmatprep.subr.mxu0 0.0
    %550 = vmatpush2.msra.mxu0 0.0
    %551 = vmatprep.subr.mxu0 0.0
    %552 = vmatpush2.msra.mxu0 0.0
    %553 = vmatprep.subr.mxu0 0.0
    %554 = vmatpush2.msra.mxu0 0.0
    %555 = vmatprep.subr.mxu0 0.0
    %556 = vmatpush2.msra.mxu0 0.0
    %557 = vmatprep.subr.mxu0 0.0
    %558 = vmatpush2.msra.mxu0 0.0
    %559 = vmatprep.subr.mxu0 0.0
    %560 = vmatpush2.msra.mxu0 0.0
    %561 = vmatprep.subr.mxu0 0.0
    %562 = vmatpush2.msra.mxu0 0.0
    %563 = vmatprep.subr.mxu0 0.0
    %564 = vmatpush2.msra.mxu0 0.0
    %565 = vmatprep.subr.mxu0 0.0
    %566 = vmatpush2.msra.mxu0 0.0
    %567 = vmatprep.subr.mxu0 0.0
    %568 = vmatpush2.msra.mxu0 0.0
    %569 = vmatprep.subr.mxu0 0.0
    %570 = vmatpush2.msra.mxu0 0.0
    %571 = vmatprep.subr.mxu0 0.0
    %572 = vmatpush2.msra.mxu0 0.0
    %573 = vmatprep.subr.mxu0 0.0
    %574 = vmatpush2.msra.mxu0 0.0
    %575 = vmatprep.subr.mxu0 0.0
    %576 = vmatpush2.msra.mxu0 0.0
    %577 = vmatprep.subr.mxu0 0.0
    %578 = vmatpush2.msra.mxu0 0.0
    %579 = vmatprep.mubr.f32.mxu0 0.0
    %v580 = vand.u32 %v145, 4294901760
    %v581 = vsub.f32 %v145, %v580
    %v582 = vand.u32 %v581, 4294901760
    %583 = vmatmul.mubr.f32.gmra.mxu0 %v582
    %v584 = vpop.f32.mrf.mxu0
    %v585 = vadd.f32 %v483, %v584
    %v586 = vpop.f32.mrf.mxu0
    %587 = vmatprep.mubr.f32.mxu0 0.0
    %v588 = vand.u32 %v148, 4294901760
    %v589 = vsub.f32 %v148, %v588
    %v590 = vand.u32 %v589, 4294901760
    %591 = vmatmul.mubr.f32.gmra.mxu0 %v590
    %v592 = vpop.f32.mrf.mxu0
    %v593 = vadd.f32 %v490, %v592
    %v594 = vpop.f32.mrf.mxu0
    %595 = vmatprep.mubr.f32.mxu0 0.0
    %v596 = vand.u32 %v151, 4294901760
    %v597 = vsub.f32 %v151, %v596
    %v598 = vand.u32 %v597, 4294901760
    %599 = vmatmul.mubr.f32.gmra.mxu0 %v598
    %v600 = vpop.f32.mrf.mxu0
    %v601 = vadd.f32 %v497, %v600
    %v602 = vpop.f32.mrf.mxu0
    %603 = vmatprep.mubr.f32.mxu0 0.0
    %v604 = vand.u32 %v154, 4294901760
    %v605 = vsub.f32 %v154, %v604
    %v606 = vand.u32 %v605, 4294901760
    %607 = vmatmul.mubr.f32.gmra.mxu0 %v606
    %v608 = vpop.f32.mrf.mxu0
    %v609 = vadd.f32 %v504, %v608
    %v610 = vpop.f32.mrf.mxu0
    %611 = vdwg.mxu0
    %612 = vmatprep.subr.mxu0 0.0
    %613 = vmatpush1.msra.mxu0 0.0
    %614 = vmatprep.subr.mxu0 0.0
    %615 = vmatpush1.msra.mxu0 0.0
    %616 = vmatprep.subr.mxu0 0.0
    %617 = vmatpush1.msra.mxu0 0.0
    %618 = vmatprep.subr.mxu0 0.0
    %619 = vmatpush1.msra.mxu0 0.0
    %620 = vmatprep.subr.mxu0 0.0
    %621 = vmatpush1.msra.mxu0 0.0
    %622 = vmatprep.subr.mxu0 0.0
    %623 = vmatpush1.msra.mxu0 0.0
    %624 = vmatprep.subr.mxu0 0.0
    %625 = vmatpush1.msra.mxu0 0.0
    %626 = vmatprep.subr.mxu0 0.0
    %627 = vmatpush1.msra.mxu0 0.0
    %628 = vmatprep.subr.mxu0 0.0
    %v629 = vand.u32 %v78, 4294901760
    %v630 = vsub.f32 %v78, %v629
    %v631 = vand.u32 %v630, 4294901760
    %632 = vmatpush1.msra.mxu0 %v631
    %633 = vmatprep.subr.mxu0 0.0
    %v634 = vand.u32 %v77, 4294901760
    %v635 = vsub.f32 %v77, %v634
    %v636 = vand.u32 %v635, 4294901760
    %637 = vmatpush1.msra.mxu0 %v636
    %638 = vmatprep.subr.mxu0 0.0
    %v639 = vand.u32 %v76, 4294901760
    %v640 = vsub.f32 %v76, %v639
    %v641 = vand.u32 %v640, 4294901760
    %642 = vmatpush1.msra.mxu0 %v641
    %643 = vmatprep.subr.mxu0 0.0
    %v644 = vand.u32 %v75, 4294901760
    %v645 = vsub.f32 %v75, %v644
    %v646 = vand.u32 %v645, 4294901760
    %647 = vmatpush1.msra.mxu0 %v646
    %648 = vmatprep.subr.mxu0 0.0
    %v649 = vand.u32 %v74, 4294901760
    %v650 = vsub.f32 %v74, %v649
    %v651 = vand.u32 %v650, 4294901760
    %652 = vmatpush1.msra.mxu0 %v651
    %653 = vmatprep.subr.mxu0 0.0
    %v654 = vand.u32 %v73, 4294901760
    %v655 = vsub.f32 %v73, %v654
    %v656 = vand.u32 %v655, 4294901760
    %657 = vmatpush1.msra.mxu0 %v656
    %658 = vmatprep.subr.mxu0 0.0
    %v659 = vand.u32 %v72, 4294901760
    %v660 = vsub.f32 %v72, %v659
    %v661 = vand.u32 %v660, 4294901760
    %662 = vmatpush1.msra.mxu0 %v661
    %663 = vmatprep.subr.mxu0 0.0
    %v664 = vand.u32 %v71, 4294901760
    %v665 = vsub.f32 %v71, %v664
    %v666 = vand.u32 %v665, 4294901760
    %667 = vmatpush1.msra.mxu0 %v666
    %668 = vmatprep.subr.mxu0 0.0
    %669 = vmatpush2.msra.mxu0 0.0
    %670 = vmatprep.subr.mxu0 0.0
    %671 = vmatpush2.msra.mxu0 0.0
    %672 = vmatprep.subr.mxu0 0.0
    %673 = vmatpush2.msra.mxu0 0.0
    %674 = vmatprep.subr.mxu0 0.0
    %675 = vmatpush2.msra.mxu0 0.0
    %676 = vmatprep.subr.mxu0 0.0
    %677 = vmatpush2.msra.mxu0 0.0
    %678 = vmatprep.subr.mxu0 0.0
    %679 = vmatpush2.msra.mxu0 0.0
    %680 = vmatprep.subr.mxu0 0.0
    %681 = vmatpush2.msra.mxu0 0.0
    %682 = vmatprep.subr.mxu0 0.0
    %683 = vmatpush2.msra.mxu0 0.0
    %684 = vmatprep.subr.mxu0 0.0
    %685 = vmatpush2.msra.mxu0 0.0
    %686 = vmatprep.subr.mxu0 0.0
    %687 = vmatpush2.msra.mxu0 0.0
    %688 = vmatprep.subr.mxu0 0.0
    %689 = vmatpush2.msra.mxu0 0.0
    %690 = vmatprep.subr.mxu0 0.0
    %691 = vmatpush2.msra.mxu0 0.0
    %692 = vmatprep.subr.mxu0 0.0
    %693 = vmatpush2.msra.mxu0 0.0
    %694 = vmatprep.subr.mxu0 0.0
    %695 = vmatpush2.msra.mxu0 0.0
    %696 = vmatprep.subr.mxu0 0.0
    %697 = vmatpush2.msra.mxu0 0.0
    %698 = vmatprep.subr.mxu0 0.0
    %699 = vmatpush2.msra.mxu0 0.0
    %700 = vmatprep.mubr.f32.mxu0 0.0
    %v701 = vand.u32 %v145, 4294901760
    %702 = vmatmul.mubr.f32.gmra.mxu0 %v701
    %v703 = vpop.f32.mrf.mxu0
    %v704 = vadd.f32 %v585, %v703
    %v705 = vpop.f32.mrf.mxu0
    %706 = vmatprep.mubr.f32.mxu0 0.0
    %v707 = vand.u32 %v148, 4294901760
    %708 = vmatmul.mubr.f32.gmra.mxu0 %v707
    %v709 = vpop.f32.mrf.mxu0
    %v710 = vadd.f32 %v593, %v709
    %v711 = vpop.f32.mrf.mxu0
    %712 = vmatprep.mubr.f32.mxu0 0.0
    %v713 = vand.u32 %v151, 4294901760
    %714 = vmatmul.mubr.f32.gmra.mxu0 %v713
    %v715 = vpop.f32.mrf.mxu0
    %v716 = vadd.f32 %v601, %v715
    %v717 = vpop.f32.mrf.mxu0
    %718 = vmatprep.mubr.f32.mxu0 0.0
    %v719 = vand.u32 %v154, 4294901760
    %720 = vmatmul.mubr.f32.gmra.mxu0 %v719
    %v721 = vpop.f32.mrf.mxu0
    %v722 = vadd.f32 %v609, %v721
    %v723 = vpop.f32.mrf.mxu0
    %724 = vdwg.mxu0
    %725 = vmatprep.subr.mxu0 0.0
    %726 = vmatpush1.msra.mxu0 0.0
    %727 = vmatprep.subr.mxu0 0.0
    %728 = vmatpush1.msra.mxu0 0.0
    %729 = vmatprep.subr.mxu0 0.0
    %730 = vmatpush1.msra.mxu0 0.0
    %731 = vmatprep.subr.mxu0 0.0
    %732 = vmatpush1.msra.mxu0 0.0
    %733 = vmatprep.subr.mxu0 0.0
    %734 = vmatpush1.msra.mxu0 0.0
    %735 = vmatprep.subr.mxu0 0.0
    %736 = vmatpush1.msra.mxu0 0.0
    %737 = vmatprep.subr.mxu0 0.0
    %738 = vmatpush1.msra.mxu0 0.0
    %739 = vmatprep.subr.mxu0 0.0
    %740 = vmatpush1.msra.mxu0 0.0
    %741 = vmatprep.subr.mxu0 0.0
    %v742 = vand.u32 %v78, 4294901760
    %743 = vmatpush1.msra.mxu0 %v742
    %744 = vmatprep.subr.mxu0 0.0
    %v745 = vand.u32 %v77, 4294901760
    %746 = vmatpush1.msra.mxu0 %v745
    %747 = vmatprep.subr.mxu0 0.0
    %v748 = vand.u32 %v76, 4294901760
    %749 = vmatpush1.msra.mxu0 %v748
    %750 = vmatprep.subr.mxu0 0.0
    %v751 = vand.u32 %v75, 4294901760
    %752 = vmatpush1.msra.mxu0 %v751
    %753 = vmatprep.subr.mxu0 0.0
    %v754 = vand.u32 %v74, 4294901760
    %755 = vmatpush1.msra.mxu0 %v754
    %756 = vmatprep.subr.mxu0 0.0
    %v757 = vand.u32 %v73, 4294901760
    %758 = vmatpush1.msra.mxu0 %v757
    %759 = vmatprep.subr.mxu0 0.0
    %v760 = vand.u32 %v72, 4294901760
    %761 = vmatpush1.msra.mxu0 %v760
    %762 = vmatprep.subr.mxu0 0.0
    %v763 = vand.u32 %v71, 4294901760
    %764 = vmatpush1.msra.mxu0 %v763
    %765 = vmatprep.subr.mxu0 0.0
    %766 = vmatpush2.msra.mxu0 0.0
    %767 = vmatprep.subr.mxu0 0.0
    %768 = vmatpush2.msra.mxu0 0.0
    %769 = vmatprep.subr.mxu0 0.0
    %770 = vmatpush2.msra.mxu0 0.0
    %771 = vmatprep.subr.mxu0 0.0
    %772 = vmatpush2.msra.mxu0 0.0
    %773 = vmatprep.subr.mxu0 0.0
    %774 = vmatpush2.msra.mxu0 0.0
    %775 = vmatprep.subr.mxu0 0.0
    %776 = vmatpush2.msra.mxu0 0.0
    %777 = vmatprep.subr.mxu0 0.0
    %778 = vmatpush2.msra.mxu0 0.0
    %779 = vmatprep.subr.mxu0 0.0
    %780 = vmatpush2.msra.mxu0 0.0
    %781 = vmatprep.subr.mxu0 0.0
    %782 = vmatpush2.msra.mxu0 0.0
    %783 = vmatprep.subr.mxu0 0.0
    %784 = vmatpush2.msra.mxu0 0.0
    %785 = vmatprep.subr.mxu0 0.0
    %786 = vmatpush2.msra.mxu0 0.0
    %787 = vmatprep.subr.mxu0 0.0
    %788 = vmatpush2.msra.mxu0 0.0
    %789 = vmatprep.subr.mxu0 0.0
    %790 = vmatpush2.msra.mxu0 0.0
    %791 = vmatprep.subr.mxu0 0.0
    %792 = vmatpush2.msra.mxu0 0.0
    %793 = vmatprep.subr.mxu0 0.0
    %794 = vmatpush2.msra.mxu0 0.0
    %795 = vmatprep.subr.mxu0 0.0
    %796 = vmatpush2.msra.mxu0 0.0
    %797 = vmatprep.mubr.f32.mxu0 0.0
    %v798 = vand.u32 %v145, 4294901760
    %799 = vmatmul.mubr.f32.gmra.mxu0 %v798
    %v800 = vpop.f32.mrf.mxu0
    %v801 = vadd.f32 %v704, %v800
    %v802 = vpop.f32.mrf.mxu0
    %803 = vmatprep.mubr.f32.mxu0 0.0
    %v804 = vand.u32 %v148, 4294901760
    %805 = vmatmul.mubr.f32.gmra.mxu0 %v804
    %v806 = vpop.f32.mrf.mxu0
    %v807 = vadd.f32 %v710, %v806
    %v808 = vpop.f32.mrf.mxu0
    %809 = vmatprep.mubr.f32.mxu0 0.0
    %v810 = vand.u32 %v151, 4294901760
    %811 = vmatmul.mubr.f32.gmra.mxu0 %v810
    %v812 = vpop.f32.mrf.mxu0
    %v813 = vadd.f32 %v716, %v812
    %v814 = vpop.f32.mrf.mxu0
    %815 = vmatprep.mubr.f32.mxu0 0.0
    %v816 = vand.u32 %v154, 4294901760
    %817 = vmatmul.mubr.f32.gmra.mxu0 %v816
    %v818 = vpop.f32.mrf.mxu0
    %v819 = vadd.f32 %v722, %v818
    %v820 = vpop.f32.mrf.mxu0
    %821 = vdwg.mxu0
    %v822 = vld [vmem:[#allocation3] sm:$0xff]
    %v823 = vld [vmem:[#allocation3 + $0x8] sm:$0xff]
    %v824 = vld [vmem:[#allocation3 + $0x10] sm:$0xff]
    %v825 = vld [vmem:[#allocation3 + $0x18] sm:$0xff]
    %826 = vmatprep.subr.mxu0 0.0
    %v827 = vand.u32 %v138, 4294901760
    %828 = vmatpush1.msra.mxu0 %v827
    %829 = vmatprep.subr.mxu0 0.0
    %v830 = vand.u32 %v137, 4294901760
    %831 = vmatpush1.msra.mxu0 %v830
    %832 = vmatprep.subr.mxu0 0.0
    %v833 = vand.u32 %v136, 4294901760
    %834 = vmatpush1.msra.mxu0 %v833
    %835 = vmatprep.subr.mxu0 0.0
    %v836 = vand.u32 %v135, 4294901760
    %837 = vmatpush1.msra.mxu0 %v836
    %838 = vmatprep.subr.mxu0 0.0
    %v839 = vand.u32 %v134, 4294901760
    %840 = vmatpush1.msra.mxu0 %v839
    %841 = vmatprep.subr.mxu0 0.0
    %v842 = vand.u32 %v133, 4294901760
    %843 = vmatpush1.msra.mxu0 %v842
    %844 = vmatprep.subr.mxu0 0.0
    %v845 = vand.u32 %v132, 4294901760
    %846 = vmatpush1.msra.mxu0 %v845
    %847 = vmatprep.subr.mxu0 0.0
    %v848 = vand.u32 %v131, 4294901760
    %849 = vmatpush1.msra.mxu0 %v848
    %850 = vmatprep.subr.mxu0 0.0
    %v851 = vand.u32 %v130, 4294901760
    %852 = vmatpush1.msra.mxu0 %v851
    %853 = vmatprep.subr.mxu0 0.0
    %v854 = vand.u32 %v129, 4294901760
    %855 = vmatpush1.msra.mxu0 %v854
    %856 = vmatprep.subr.mxu0 0.0
    %v857 = vand.u32 %v128, 4294901760
    %858 = vmatpush1.msra.mxu0 %v857
    %859 = vmatprep.subr.mxu0 0.0
    %v860 = vand.u32 %v127, 4294901760
    %861 = vmatpush1.msra.mxu0 %v860
    %862 = vmatprep.subr.mxu0 0.0
    %v863 = vand.u32 %v126, 4294901760
    %864 = vmatpush1.msra.mxu0 %v863
    %865 = vmatprep.subr.mxu0 0.0
    %v866 = vand.u32 %v125, 4294901760
    %867 = vmatpush1.msra.mxu0 %v866
    %868 = vmatprep.subr.mxu0 0.0
    %v869 = vand.u32 %v124, 4294901760
    %870 = vmatpush1.msra.mxu0 %v869
    %871 = vmatprep.subr.mxu0 0.0
    %v872 = vand.u32 %v123, 4294901760
    %873 = vmatpush1.msra.mxu0 %v872
    %874 = vmatprep.subr.mxu0 0.0
    %875 = vmatpush2.msra.mxu0 0.0
    %876 = vmatprep.subr.mxu0 0.0
    %877 = vmatpush2.msra.mxu0 0.0
    %878 = vmatprep.subr.mxu0 0.0
    %879 = vmatpush2.msra.mxu0 0.0
    %880 = vmatprep.subr.mxu0 0.0
    %881 = vmatpush2.msra.mxu0 0.0
    %882 = vmatprep.subr.mxu0 0.0
    %883 = vmatpush2.msra.mxu0 0.0
    %884 = vmatprep.subr.mxu0 0.0
    %885 = vmatpush2.msra.mxu0 0.0
    %886 = vmatprep.subr.mxu0 0.0
    %887 = vmatpush2.msra.mxu0 0.0
    %888 = vmatprep.subr.mxu0 0.0
    %889 = vmatpush2.msra.mxu0 0.0
    %890 = vmatprep.subr.mxu0 0.0
    %891 = vmatpush2.msra.mxu0 0.0
    %892 = vmatprep.subr.mxu0 0.0
    %893 = vmatpush2.msra.mxu0 0.0
    %894 = vmatprep.subr.mxu0 0.0
    %895 = vmatpush2.msra.mxu0 0.0
    %896 = vmatprep.subr.mxu0 0.0
    %897 = vmatpush2.msra.mxu0 0.0
    %898 = vmatprep.subr.mxu0 0.0
    %899 = vmatpush2.msra.mxu0 0.0
    %900 = vmatprep.subr.mxu0 0.0
    %901 = vmatpush2.msra.mxu0 0.0
    %902 = vmatprep.subr.mxu0 0.0
    %903 = vmatpush2.msra.mxu0 0.0
    %904 = vmatprep.subr.mxu0 0.0
    %905 = vmatpush2.msra.mxu0 0.0
    %906 = vmatprep.mubr.f32.mxu0 0.0
    %v907 = vand.u32 %v822, 4294901760
    %v908 = vsub.f32 %v822, %v907
    %v909 = vand.u32 %v908, 4294901760
    %v910 = vsub.f32 %v908, %v909
    %v911 = vand.u32 %v910, 4294901760
    %912 = vmatmul.mubr.f32.gmra.mxu0 %v911
    %v913 = vpop.f32.mrf.mxu0
    %v914 = vadd.f32 0.0, %v913
    %v915 = vpop.f32.mrf.mxu0
    %916 = vmatprep.mubr.f32.mxu0 0.0
    %v917 = vand.u32 %v823, 4294901760
    %v918 = vsub.f32 %v823, %v917
    %v919 = vand.u32 %v918, 4294901760
    %v920 = vsub.f32 %v918, %v919
    %v921 = vand.u32 %v920, 4294901760
    %922 = vmatmul.mubr.f32.gmra.mxu0 %v921
    %v923 = vpop.f32.mrf.mxu0
    %v924 = vadd.f32 0.0, %v923
    %v925 = vpop.f32.mrf.mxu0
    %926 = vmatprep.mubr.f32.mxu0 0.0
    %v927 = vand.u32 %v824, 4294901760
    %v928 = vsub.f32 %v824, %v927
    %v929 = vand.u32 %v928, 4294901760
    %v930 = vsub.f32 %v928, %v929
    %v931 = vand.u32 %v930, 4294901760
    %932 = vmatmul.mubr.f32.gmra.mxu0 %v931
    %v933 = vpop.f32.mrf.mxu0
    %v934 = vadd.f32 0.0, %v933
    %v935 = vpop.f32.mrf.mxu0
    %936 = vmatprep.mubr.f32.mxu0 0.0
    %v937 = vand.u32 %v825, 4294901760
    %v938 = vsub.f32 %v825, %v937
    %v939 = vand.u32 %v938, 4294901760
    %v940 = vsub.f32 %v938, %v939
    %v941 = vand.u32 %v940, 4294901760
    %942 = vmatmul.mubr.f32.gmra.mxu0 %v941
    %v943 = vpop.f32.mrf.mxu0
    %v944 = vadd.f32 0.0, %v943
    %v945 = vpop.f32.mrf.mxu0
    %946 = vdwg.mxu0
    %947 = vmatprep.subr.mxu0 0.0
    %v948 = vand.u32 %v138, 4294901760
    %v949 = vsub.f32 %v138, %v948
    %v950 = vand.u32 %v949, 4294901760
    %v951 = vsub.f32 %v949, %v950
    %v952 = vand.u32 %v951, 4294901760
    %953 = vmatpush1.msra.mxu0 %v952
    %954 = vmatprep.subr.mxu0 0.0
    %v955 = vand.u32 %v137, 4294901760
    %v956 = vsub.f32 %v137, %v955
    %v957 = vand.u32 %v956, 4294901760
    %v958 = vsub.f32 %v956, %v957
    %v959 = vand.u32 %v958, 4294901760
    %960 = vmatpush1.msra.mxu0 %v959
    %961 = vmatprep.subr.mxu0 0.0
    %v962 = vand.u32 %v136, 4294901760
    %v963 = vsub.f32 %v136, %v962
    %v964 = vand.u32 %v963, 4294901760
    %v965 = vsub.f32 %v963, %v964
    %v966 = vand.u32 %v965, 4294901760
    %967 = vmatpush1.msra.mxu0 %v966
    %968 = vmatprep.subr.mxu0 0.0
    %v969 = vand.u32 %v135, 4294901760
    %v970 = vsub.f32 %v135, %v969
    %v971 = vand.u32 %v970, 4294901760
    %v972 = vsub.f32 %v970, %v971
    %v973 = vand.u32 %v972, 4294901760
    %974 = vmatpush1.msra.mxu0 %v973
    %975 = vmatprep.subr.mxu0 0.0
    %v976 = vand.u32 %v134, 4294901760
    %v977 = vsub.f32 %v134, %v976
    %v978 = vand.u32 %v977, 4294901760
    %v979 = vsub.f32 %v977, %v978
    %v980 = vand.u32 %v979, 4294901760
    %981 = vmatpush1.msra.mxu0 %v980
    %982 = vmatprep.subr.mxu0 0.0
    %v983 = vand.u32 %v133, 4294901760
    %v984 = vsub.f32 %v133, %v983
    %v985 = vand.u32 %v984, 4294901760
    %v986 = vsub.f32 %v984, %v985
    %v987 = vand.u32 %v986, 4294901760
    %988 = vmatpush1.msra.mxu0 %v987
    %989 = vmatprep.subr.mxu0 0.0
    %v990 = vand.u32 %v132, 4294901760
    %v991 = vsub.f32 %v132, %v990
    %v992 = vand.u32 %v991, 4294901760
    %v993 = vsub.f32 %v991, %v992
    %v994 = vand.u32 %v993, 4294901760
    %995 = vmatpush1.msra.mxu0 %v994
    %996 = vmatprep.subr.mxu0 0.0
    %v997 = vand.u32 %v131, 4294901760
    %v998 = vsub.f32 %v131, %v997
    %v999 = vand.u32 %v998, 4294901760
    %v1000 = vsub.f32 %v998, %v999
    %v1001 = vand.u32 %v1000, 4294901760
    %1002 = vmatpush1.msra.mxu0 %v1001
    %1003 = vmatprep.subr.mxu0 0.0
    %v1004 = vand.u32 %v130, 4294901760
    %v1005 = vsub.f32 %v130, %v1004
    %v1006 = vand.u32 %v1005, 4294901760
    %v1007 = vsub.f32 %v1005, %v1006
    %v1008 = vand.u32 %v1007, 4294901760
    %1009 = vmatpush1.msra.mxu0 %v1008
    %1010 = vmatprep.subr.mxu0 0.0
    %v1011 = vand.u32 %v129, 4294901760
    %v1012 = vsub.f32 %v129, %v1011
    %v1013 = vand.u32 %v1012, 4294901760
    %v1014 = vsub.f32 %v1012, %v1013
    %v1015 = vand.u32 %v1014, 4294901760
    %1016 = vmatpush1.msra.mxu0 %v1015
    %1017 = vmatprep.subr.mxu0 0.0
    %v1018 = vand.u32 %v128, 4294901760
    %v1019 = vsub.f32 %v128, %v1018
    %v1020 = vand.u32 %v1019, 4294901760
    %v1021 = vsub.f32 %v1019, %v1020
    %v1022 = vand.u32 %v1021, 4294901760
    %1023 = vmatpush1.msra.mxu0 %v1022
    %1024 = vmatprep.subr.mxu0 0.0
    %v1025 = vand.u32 %v127, 4294901760
    %v1026 = vsub.f32 %v127, %v1025
    %v1027 = vand.u32 %v1026, 4294901760
    %v1028 = vsub.f32 %v1026, %v1027
    %v1029 = vand.u32 %v1028, 4294901760
    %1030 = vmatpush1.msra.mxu0 %v1029
    %1031 = vmatprep.subr.mxu0 0.0
    %v1032 = vand.u32 %v126, 4294901760
    %v1033 = vsub.f32 %v126, %v1032
    %v1034 = vand.u32 %v1033, 4294901760
    %v1035 = vsub.f32 %v1033, %v1034
    %v1036 = vand.u32 %v1035, 4294901760
    %1037 = vmatpush1.msra.mxu0 %v1036
    %1038 = vmatprep.subr.mxu0 0.0
    %v1039 = vand.u32 %v125, 4294901760
    %v1040 = vsub.f32 %v125, %v1039
    %v1041 = vand.u32 %v1040, 4294901760
    %v1042 = vsub.f32 %v1040, %v1041
    %v1043 = vand.u32 %v1042, 4294901760
    %1044 = vmatpush1.msra.mxu0 %v1043
    %1045 = vmatprep.subr.mxu0 0.0
    %v1046 = vand.u32 %v124, 4294901760
    %v1047 = vsub.f32 %v124, %v1046
    %v1048 = vand.u32 %v1047, 4294901760
    %v1049 = vsub.f32 %v1047, %v1048
    %v1050 = vand.u32 %v1049, 4294901760
    %1051 = vmatpush1.msra.mxu0 %v1050
    %1052 = vmatprep.subr.mxu0 0.0
    %v1053 = vand.u32 %v123, 4294901760
    %v1054 = vsub.f32 %v123, %v1053
    %v1055 = vand.u32 %v1054, 4294901760
    %v1056 = vsub.f32 %v1054, %v1055
    %v1057 = vand.u32 %v1056, 4294901760
    %1058 = vmatpush1.msra.mxu0 %v1057
    %1059 = vmatprep.subr.mxu0 0.0
    %1060 = vmatpush2.msra.mxu0 0.0
    %1061 = vmatprep.subr.mxu0 0.0
    %1062 = vmatpush2.msra.mxu0 0.0
    %1063 = vmatprep.subr.mxu0 0.0
    %1064 = vmatpush2.msra.mxu0 0.0
    %1065 = vmatprep.subr.mxu0 0.0
    %1066 = vmatpush2.msra.mxu0 0.0
    %1067 = vmatprep.subr.mxu0 0.0
    %1068 = vmatpush2.msra.mxu0 0.0
    %1069 = vmatprep.subr.mxu0 0.0
    %1070 = vmatpush2.msra.mxu0 0.0
    %1071 = vmatprep.subr.mxu0 0.0
    %1072 = vmatpush2.msra.mxu0 0.0
    %1073 = vmatprep.subr.mxu0 0.0
    %1074 = vmatpush2.msra.mxu0 0.0
    %1075 = vmatprep.subr.mxu0 0.0
    %1076 = vmatpush2.msra.mxu0 0.0
    %1077 = vmatprep.subr.mxu0 0.0
    %1078 = vmatpush2.msra.mxu0 0.0
    %1079 = vmatprep.subr.mxu0 0.0
    %1080 = vmatpush2.msra.mxu0 0.0
    %1081 = vmatprep.subr.mxu0 0.0
    %1082 = vmatpush2.msra.mxu0 0.0
    %1083 = vmatprep.subr.mxu0 0.0
    %1084 = vmatpush2.msra.mxu0 0.0
    %1085 = vmatprep.subr.mxu0 0.0
    %1086 = vmatpush2.msra.mxu0 0.0
    %1087 = vmatprep.subr.mxu0 0.0
    %1088 = vmatpush2.msra.mxu0 0.0
    %1089 = vmatprep.subr.mxu0 0.0
    %1090 = vmatpush2.msra.mxu0 0.0
    %1091 = vmatprep.mubr.f32.mxu0 0.0
    %v1092 = vand.u32 %v822, 4294901760
    %1093 = vmatmul.mubr.f32.gmra.mxu0 %v1092
    %v1094 = vpop.f32.mrf.mxu0
    %v1095 = vadd.f32 %v914, %v1094
    %v1096 = vpop.f32.mrf.mxu0
    %1097 = vmatprep.mubr.f32.mxu0 0.0
    %v1098 = vand.u32 %v823, 4294901760
    %1099 = vmatmul.mubr.f32.gmra.mxu0 %v1098
    %v1100 = vpop.f32.mrf.mxu0
    %v1101 = vadd.f32 %v924, %v1100
    %v1102 = vpop.f32.mrf.mxu0
    %1103 = vmatprep.mubr.f32.mxu0 0.0
    %v1104 = vand.u32 %v824, 4294901760
    %1105 = vmatmul.mubr.f32.gmra.mxu0 %v1104
    %v1106 = vpop.f32.mrf.mxu0
    %v1107 = vadd.f32 %v934, %v1106
    %v1108 = vpop.f32.mrf.mxu0
    %1109 = vmatprep.mubr.f32.mxu0 0.0
    %v1110 = vand.u32 %v825, 4294901760
    %1111 = vmatmul.mubr.f32.gmra.mxu0 %v1110
    %v1112 = vpop.f32.mrf.mxu0
    %v1113 = vadd.f32 %v944, %v1112
    %v1114 = vpop.f32.mrf.mxu0
    %1115 = vdwg.mxu0
    %1116 = vmatprep.subr.mxu0 0.0
    %v1117 = vand.u32 %v138, 4294901760
    %v1118 = vsub.f32 %v138, %v1117
    %1119 = vmatpush1.msra.mxu0 %v1118
    %1120 = vmatprep.subr.mxu0 0.0
    %v1121 = vand.u32 %v137, 4294901760
    %v1122 = vsub.f32 %v137, %v1121
    %1123 = vmatpush1.msra.mxu0 %v1122
    %1124 = vmatprep.subr.mxu0 0.0
    %v1125 = vand.u32 %v136, 4294901760
    %v1126 = vsub.f32 %v136, %v1125
    %1127 = vmatpush1.msra.mxu0 %v1126
    %1128 = vmatprep.subr.mxu0 0.0
    %v1129 = vand.u32 %v135, 4294901760
    %v1130 = vsub.f32 %v135, %v1129
    %1131 = vmatpush1.msra.mxu0 %v1130
    %1132 = vmatprep.subr.mxu0 0.0
    %v1133 = vand.u32 %v134, 4294901760
    %v1134 = vsub.f32 %v134, %v1133
    %1135 = vmatpush1.msra.mxu0 %v1134
    %1136 = vmatprep.subr.mxu0 0.0
    %v1137 = vand.u32 %v133, 4294901760
    %v1138 = vsub.f32 %v133, %v1137
    %1139 = vmatpush1.msra.mxu0 %v1138
    %1140 = vmatprep.subr.mxu0 0.0
    %v1141 = vand.u32 %v132, 4294901760
    %v1142 = vsub.f32 %v132, %v1141
    %1143 = vmatpush1.msra.mxu0 %v1142
    %1144 = vmatprep.subr.mxu0 0.0
    %v1145 = vand.u32 %v131, 4294901760
    %v1146 = vsub.f32 %v131, %v1145
    %1147 = vmatpush1.msra.mxu0 %v1146
    %1148 = vmatprep.subr.mxu0 0.0
    %v1149 = vand.u32 %v130, 4294901760
    %v1150 = vsub.f32 %v130, %v1149
    %1151 = vmatpush1.msra.mxu0 %v1150
    %1152 = vmatprep.subr.mxu0 0.0
    %v1153 = vand.u32 %v129, 4294901760
    %v1154 = vsub.f32 %v129, %v1153
    %1155 = vmatpush1.msra.mxu0 %v1154
    %1156 = vmatprep.subr.mxu0 0.0
    %v1157 = vand.u32 %v128, 4294901760
    %v1158 = vsub.f32 %v128, %v1157
    %1159 = vmatpush1.msra.mxu0 %v1158
    %1160 = vmatprep.subr.mxu0 0.0
    %v1161 = vand.u32 %v127, 4294901760
    %v1162 = vsub.f32 %v127, %v1161
    %1163 = vmatpush1.msra.mxu0 %v1162
    %1164 = vmatprep.subr.mxu0 0.0
    %v1165 = vand.u32 %v126, 4294901760
    %v1166 = vsub.f32 %v126, %v1165
    %1167 = vmatpush1.msra.mxu0 %v1166
    %1168 = vmatprep.subr.mxu0 0.0
    %v1169 = vand.u32 %v125, 4294901760
    %v1170 = vsub.f32 %v125, %v1169
    %1171 = vmatpush1.msra.mxu0 %v1170
    %1172 = vmatprep.subr.mxu0 0.0
    %v1173 = vand.u32 %v124, 4294901760
    %v1174 = vsub.f32 %v124, %v1173
    %1175 = vmatpush1.msra.mxu0 %v1174
    %1176 = vmatprep.subr.mxu0 0.0
    %v1177 = vand.u32 %v123, 4294901760
    %v1178 = vsub.f32 %v123, %v1177
    %1179 = vmatpush1.msra.mxu0 %v1178
    %1180 = vmatprep.subr.mxu0 0.0
    %1181 = vmatpush2.msra.mxu0 0.0
    %1182 = vmatprep.subr.mxu0 0.0
    %1183 = vmatpush2.msra.mxu0 0.0
    %1184 = vmatprep.subr.mxu0 0.0
    %1185 = vmatpush2.msra.mxu0 0.0
    %1186 = vmatprep.subr.mxu0 0.0
    %1187 = vmatpush2.msra.mxu0 0.0
    %1188 = vmatprep.subr.mxu0 0.0
    %1189 = vmatpush2.msra.mxu0 0.0
    %1190 = vmatprep.subr.mxu0 0.0
    %1191 = vmatpush2.msra.mxu0 0.0
    %1192 = vmatprep.subr.mxu0 0.0
    %1193 = vmatpush2.msra.mxu0 0.0
    %1194 = vmatprep.subr.mxu0 0.0
    %1195 = vmatpush2.msra.mxu0 0.0
    %1196 = vmatprep.subr.mxu0 0.0
    %1197 = vmatpush2.msra.mxu0 0.0
    %1198 = vmatprep.subr.mxu0 0.0
    %1199 = vmatpush2.msra.mxu0 0.0
    %1200 = vmatprep.subr.mxu0 0.0
    %1201 = vmatpush2.msra.mxu0 0.0
    %1202 = vmatprep.subr.mxu0 0.0
    %1203 = vmatpush2.msra.mxu0 0.0
    %1204 = vmatprep.subr.mxu0 0.0
    %1205 = vmatpush2.msra.mxu0 0.0
    %1206 = vmatprep.subr.mxu0 0.0
    %1207 = vmatpush2.msra.mxu0 0.0
    %1208 = vmatprep.subr.mxu0 0.0
    %1209 = vmatpush2.msra.mxu0 0.0
    %1210 = vmatprep.subr.mxu0 0.0
    %1211 = vmatpush2.msra.mxu0 0.0
    %1212 = vmatprep.mubr.f32.mxu0 0.0
    %v1213 = vand.u32 %v822, 4294901760
    %v1214 = vsub.f32 %v822, %v1213
    %1215 = vmatmul.mubr.f32.gmra.mxu0 %v1214
    %v1216 = vpop.f32.mrf.mxu0
    %v1217 = vadd.f32 %v1095, %v1216
    %v1218 = vpop.f32.mrf.mxu0
    %1219 = vmatprep.mubr.f32.mxu0 0.0
    %v1220 = vand.u32 %v823, 4294901760
    %v1221 = vsub.f32 %v823, %v1220
    %1222 = vmatmul.mubr.f32.gmra.mxu0 %v1221
    %v1223 = vpop.f32.mrf.mxu0
    %v1224 = vadd.f32 %v1101, %v1223
    %v1225 = vpop.f32.mrf.mxu0
    %1226 = vmatprep.mubr.f32.mxu0 0.0
    %v1227 = vand.u32 %v824, 4294901760
    %v1228 = vsub.f32 %v824, %v1227
    %1229 = vmatmul.mubr.f32.gmra.mxu0 %v1228
    %v1230 = vpop.f32.mrf.mxu0
    %v1231 = vadd.f32 %v1107, %v1230
    %v1232 = vpop.f32.mrf.mxu0
    %1233 = vmatprep.mubr.f32.mxu0 0.0
    %v1234 = vand.u32 %v825, 4294901760
    %v1235 = vsub.f32 %v825, %v1234
    %1236 = vmatmul.mubr.f32.gmra.mxu0 %v1235
    %v1237 = vpop.f32.mrf.mxu0
    %v1238 = vadd.f32 %v1113, %v1237
    %v1239 = vpop.f32.mrf.mxu0
    %1240 = vdwg.mxu0
    %1241 = vmatprep.subr.mxu0 0.0
    %v1242 = vand.u32 %v138, 4294901760
    %1243 = vmatpush1.msra.mxu0 %v1242
    %1244 = vmatprep.subr.mxu0 0.0
    %v1245 = vand.u32 %v137, 4294901760
    %1246 = vmatpush1.msra.mxu0 %v1245
    %1247 = vmatprep.subr.mxu0 0.0
    %v1248 = vand.u32 %v136, 4294901760
    %1249 = vmatpush1.msra.mxu0 %v1248
    %1250 = vmatprep.subr.mxu0 0.0
    %v1251 = vand.u32 %v135, 4294901760
    %1252 = vmatpush1.msra.mxu0 %v1251
    %1253 = vmatprep.subr.mxu0 0.0
    %v1254 = vand.u32 %v134, 4294901760
    %1255 = vmatpush1.msra.mxu0 %v1254
    %1256 = vmatprep.subr.mxu0 0.0
    %v1257 = vand.u32 %v133, 4294901760
    %1258 = vmatpush1.msra.mxu0 %v1257
    %1259 = vmatprep.subr.mxu0 0.0
    %v1260 = vand.u32 %v132, 4294901760
    %1261 = vmatpush1.msra.mxu0 %v1260
    %1262 = vmatprep.subr.mxu0 0.0
    %v1263 = vand.u32 %v131, 4294901760
    %1264 = vmatpush1.msra.mxu0 %v1263
    %1265 = vmatprep.subr.mxu0 0.0
    %v1266 = vand.u32 %v130, 4294901760
    %1267 = vmatpush1.msra.mxu0 %v1266
    %1268 = vmatprep.subr.mxu0 0.0
    %v1269 = vand.u32 %v129, 4294901760
    %1270 = vmatpush1.msra.mxu0 %v1269
    %1271 = vmatprep.subr.mxu0 0.0
    %v1272 = vand.u32 %v128, 4294901760
    %1273 = vmatpush1.msra.mxu0 %v1272
    %1274 = vmatprep.subr.mxu0 0.0
    %v1275 = vand.u32 %v127, 4294901760
    %1276 = vmatpush1.msra.mxu0 %v1275
    %1277 = vmatprep.subr.mxu0 0.0
    %v1278 = vand.u32 %v126, 4294901760
    %1279 = vmatpush1.msra.mxu0 %v1278
    %1280 = vmatprep.subr.mxu0 0.0
    %v1281 = vand.u32 %v125, 4294901760
    %1282 = vmatpush1.msra.mxu0 %v1281
    %1283 = vmatprep.subr.mxu0 0.0
    %v1284 = vand.u32 %v124, 4294901760
    %1285 = vmatpush1.msra.mxu0 %v1284
    %1286 = vmatprep.subr.mxu0 0.0
    %v1287 = vand.u32 %v123, 4294901760
    %1288 = vmatpush1.msra.mxu0 %v1287
    %1289 = vmatprep.subr.mxu0 0.0
    %1290 = vmatpush2.msra.mxu0 0.0
    %1291 = vmatprep.subr.mxu0 0.0
    %1292 = vmatpush2.msra.mxu0 0.0
    %1293 = vmatprep.subr.mxu0 0.0
    %1294 = vmatpush2.msra.mxu0 0.0
    %1295 = vmatprep.subr.mxu0 0.0
    %1296 = vmatpush2.msra.mxu0 0.0
    %1297 = vmatprep.subr.mxu0 0.0
    %1298 = vmatpush2.msra.mxu0 0.0
    %1299 = vmatprep.subr.mxu0 0.0
    %1300 = vmatpush2.msra.mxu0 0.0
    %1301 = vmatprep.subr.mxu0 0.0
    %1302 = vmatpush2.msra.mxu0 0.0
    %1303 = vmatprep.subr.mxu0 0.0
    %1304 = vmatpush2.msra.mxu0 0.0
    %1305 = vmatprep.subr.mxu0 0.0
    %1306 = vmatpush2.msra.mxu0 0.0
    %1307 = vmatprep.subr.mxu0 0.0
    %1308 = vmatpush2.msra.mxu0 0.0
    %1309 = vmatprep.subr.mxu0 0.0
    %1310 = vmatpush2.msra.mxu0 0.0
    %1311 = vmatprep.subr.mxu0 0.0
    %1312 = vmatpush2.msra.mxu0 0.0
    %1313 = vmatprep.subr.mxu0 0.0
    %1314 = vmatpush2.msra.mxu0 0.0
    %1315 = vmatprep.subr.mxu0 0.0
    %1316 = vmatpush2.msra.mxu0 0.0
    %1317 = vmatprep.subr.mxu0 0.0
    %1318 = vmatpush2.msra.mxu0 0.0
    %1319 = vmatprep.subr.mxu0 0.0
    %1320 = vmatpush2.msra.mxu0 0.0
    %1321 = vmatprep.mubr.f32.mxu0 0.0
    %v1322 = vand.u32 %v822, 4294901760
    %v1323 = vsub.f32 %v822, %v1322
    %v1324 = vand.u32 %v1323, 4294901760
    %1325 = vmatmul.mubr.f32.gmra.mxu0 %v1324
    %v1326 = vpop.f32.mrf.mxu0
    %v1327 = vadd.f32 %v1217, %v1326
    %v1328 = vpop.f32.mrf.mxu0
    %1329 = vmatprep.mubr.f32.mxu0 0.0
    %v1330 = vand.u32 %v823, 4294901760
    %v1331 = vsub.f32 %v823, %v1330
    %v1332 = vand.u32 %v1331, 4294901760
    %1333 = vmatmul.mubr.f32.gmra.mxu0 %v1332
    %v1334 = vpop.f32.mrf.mxu0
    %v1335 = vadd.f32 %v1224, %v1334
    %v1336 = vpop.f32.mrf.mxu0
    %1337 = vmatprep.mubr.f32.mxu0 0.0
    %v1338 = vand.u32 %v824, 4294901760
    %v1339 = vsub.f32 %v824, %v1338
    %v1340 = vand.u32 %v1339, 4294901760
    %1341 = vmatmul.mubr.f32.gmra.mxu0 %v1340
    %v1342 = vpop.f32.mrf.mxu0
    %v1343 = vadd.f32 %v1231, %v1342
    %v1344 = vpop.f32.mrf.mxu0
    %1345 = vmatprep.mubr.f32.mxu0 0.0
    %v1346 = vand.u32 %v825, 4294901760
    %v1347 = vsub.f32 %v825, %v1346
    %v1348 = vand.u32 %v1347, 4294901760
    %1349 = vmatmul.mubr.f32.gmra.mxu0 %v1348
    %v1350 = vpop.f32.mrf.mxu0
    %v1351 = vadd.f32 %v1238, %v1350
    %v1352 = vpop.f32.mrf.mxu0
    %1353 = vdwg.mxu0
    %1354 = vmatprep.subr.mxu0 0.0
    %v1355 = vand.u32 %v138, 4294901760
    %v1356 = vsub.f32 %v138, %v1355
    %v1357 = vand.u32 %v1356, 4294901760
    %1358 = vmatpush1.msra.mxu0 %v1357
    %1359 = vmatprep.subr.mxu0 0.0
    %v1360 = vand.u32 %v137, 4294901760
    %v1361 = vsub.f32 %v137, %v1360
    %v1362 = vand.u32 %v1361, 4294901760
    %1363 = vmatpush1.msra.mxu0 %v1362
    %1364 = vmatprep.subr.mxu0 0.0
    %v1365 = vand.u32 %v136, 4294901760
    %v1366 = vsub.f32 %v136, %v1365
    %v1367 = vand.u32 %v1366, 4294901760
    %1368 = vmatpush1.msra.mxu0 %v1367
    %1369 = vmatprep.subr.mxu0 0.0
    %v1370 = vand.u32 %v135, 4294901760
    %v1371 = vsub.f32 %v135, %v1370
    %v1372 = vand.u32 %v1371, 4294901760
    %1373 = vmatpush1.msra.mxu0 %v1372
    %1374 = vmatprep.subr.mxu0 0.0
    %v1375 = vand.u32 %v134, 4294901760
    %v1376 = vsub.f32 %v134, %v1375
    %v1377 = vand.u32 %v1376, 4294901760
    %1378 = vmatpush1.msra.mxu0 %v1377
    %1379 = vmatprep.subr.mxu0 0.0
    %v1380 = vand.u32 %v133, 4294901760
    %v1381 = vsub.f32 %v133, %v1380
    %v1382 = vand.u32 %v1381, 4294901760
    %1383 = vmatpush1.msra.mxu0 %v1382
    %1384 = vmatprep.subr.mxu0 0.0
    %v1385 = vand.u32 %v132, 4294901760
    %v1386 = vsub.f32 %v132, %v1385
    %v1387 = vand.u32 %v1386, 4294901760
    %1388 = vmatpush1.msra.mxu0 %v1387
    %1389 = vmatprep.subr.mxu0 0.0
    %v1390 = vand.u32 %v131, 4294901760
    %v1391 = vsub.f32 %v131, %v1390
    %v1392 = vand.u32 %v1391, 4294901760
    %1393 = vmatpush1.msra.mxu0 %v1392
    %1394 = vmatprep.subr.mxu0 0.0
    %v1395 = vand.u32 %v130, 4294901760
    %v1396 = vsub.f32 %v130, %v1395
    %v1397 = vand.u32 %v1396, 4294901760
    %1398 = vmatpush1.msra.mxu0 %v1397
    %1399 = vmatprep.subr.mxu0 0.0
    %v1400 = vand.u32 %v129, 4294901760
    %v1401 = vsub.f32 %v129, %v1400
    %v1402 = vand.u32 %v1401, 4294901760
    %1403 = vmatpush1.msra.mxu0 %v1402
    %1404 = vmatprep.subr.mxu0 0.0
    %v1405 = vand.u32 %v128, 4294901760
    %v1406 = vsub.f32 %v128, %v1405
    %v1407 = vand.u32 %v1406, 4294901760
    %1408 = vmatpush1.msra.mxu0 %v1407
    %1409 = vmatprep.subr.mxu0 0.0
    %v1410 = vand.u32 %v127, 4294901760
    %v1411 = vsub.f32 %v127, %v1410
    %v1412 = vand.u32 %v1411, 4294901760
    %1413 = vmatpush1.msra.mxu0 %v1412
    %1414 = vmatprep.subr.mxu0 0.0
    %v1415 = vand.u32 %v126, 4294901760
    %v1416 = vsub.f32 %v126, %v1415
    %v1417 = vand.u32 %v1416, 4294901760
    %1418 = vmatpush1.msra.mxu0 %v1417
    %1419 = vmatprep.subr.mxu0 0.0
    %v1420 = vand.u32 %v125, 4294901760
    %v1421 = vsub.f32 %v125, %v1420
    %v1422 = vand.u32 %v1421, 4294901760
    %1423 = vmatpush1.msra.mxu0 %v1422
    %1424 = vmatprep.subr.mxu0 0.0
    %v1425 = vand.u32 %v124, 4294901760
    %v1426 = vsub.f32 %v124, %v1425
    %v1427 = vand.u32 %v1426, 4294901760
    %1428 = vmatpush1.msra.mxu0 %v1427
    %1429 = vmatprep.subr.mxu0 0.0
    %v1430 = vand.u32 %v123, 4294901760
    %v1431 = vsub.f32 %v123, %v1430
    %v1432 = vand.u32 %v1431, 4294901760
    %1433 = vmatpush1.msra.mxu0 %v1432
    %1434 = vmatprep.subr.mxu0 0.0
    %1435 = vmatpush2.msra.mxu0 0.0
    %1436 = vmatprep.subr.mxu0 0.0
    %1437 = vmatpush2.msra.mxu0 0.0
    %1438 = vmatprep.subr.mxu0 0.0
    %1439 = vmatpush2.msra.mxu0 0.0
    %1440 = vmatprep.subr.mxu0 0.0
    %1441 = vmatpush2.msra.mxu0 0.0
    %1442 = vmatprep.subr.mxu0 0.0
    %1443 = vmatpush2.msra.mxu0 0.0
    %1444 = vmatprep.subr.mxu0 0.0
    %1445 = vmatpush2.msra.mxu0 0.0
    %1446 = vmatprep.subr.mxu0 0.0
    %1447 = vmatpush2.msra.mxu0 0.0
    %1448 = vmatprep.subr.mxu0 0.0
    %1449 = vmatpush2.msra.mxu0 0.0
    %1450 = vmatprep.subr.mxu0 0.0
    %1451 = vmatpush2.msra.mxu0 0.0
    %1452 = vmatprep.subr.mxu0 0.0
    %1453 = vmatpush2.msra.mxu0 0.0
    %1454 = vmatprep.subr.mxu0 0.0
    %1455 = vmatpush2.msra.mxu0 0.0
    %1456 = vmatprep.subr.mxu0 0.0
    %1457 = vmatpush2.msra.mxu0 0.0
    %1458 = vmatprep.subr.mxu0 0.0
    %1459 = vmatpush2.msra.mxu0 0.0
    %1460 = vmatprep.subr.mxu0 0.0
    %1461 = vmatpush2.msra.mxu0 0.0
    %1462 = vmatprep.subr.mxu0 0.0
    %1463 = vmatpush2.msra.mxu0 0.0
    %1464 = vmatprep.subr.mxu0 0.0
    %1465 = vmatpush2.msra.mxu0 0.0
    %1466 = vmatprep.mubr.f32.mxu0 0.0
    %v1467 = vand.u32 %v822, 4294901760
    %1468 = vmatmul.mubr.f32.gmra.mxu0 %v1467
    %v1469 = vpop.f32.mrf.mxu0
    %v1470 = vadd.f32 %v1327, %v1469
    %v1471 = vpop.f32.mrf.mxu0
    %1472 = vmatprep.mubr.f32.mxu0 0.0
    %v1473 = vand.u32 %v823, 4294901760
    %1474 = vmatmul.mubr.f32.gmra.mxu0 %v1473
    %v1475 = vpop.f32.mrf.mxu0
    %v1476 = vadd.f32 %v1335, %v1475
    %v1477 = vpop.f32.mrf.mxu0
    %1478 = vmatprep.mubr.f32.mxu0 0.0
    %v1479 = vand.u32 %v824, 4294901760
    %1480 = vmatmul.mubr.f32.gmra.mxu0 %v1479
    %v1481 = vpop.f32.mrf.mxu0
    %v1482 = vadd.f32 %v1343, %v1481
    %v1483 = vpop.f32.mrf.mxu0
    %1484 = vmatprep.mubr.f32.mxu0 0.0
    %v1485 = vand.u32 %v825, 4294901760
    %1486 = vmatmul.mubr.f32.gmra.mxu0 %v1485
    %v1487 = vpop.f32.mrf.mxu0
    %v1488 = vadd.f32 %v1351, %v1487
    %v1489 = vpop.f32.mrf.mxu0
    %1490 = vdwg.mxu0
    %1491 = vmatprep.subr.mxu0 0.0
    %v1492 = vand.u32 %v138, 4294901760
    %1493 = vmatpush1.msra.mxu0 %v1492
    %1494 = vmatprep.subr.mxu0 0.0
    %v1495 = vand.u32 %v137, 4294901760
    %1496 = vmatpush1.msra.mxu0 %v1495
    %1497 = vmatprep.subr.mxu0 0.0
    %v1498 = vand.u32 %v136, 4294901760
    %1499 = vmatpush1.msra.mxu0 %v1498
    %1500 = vmatprep.subr.mxu0 0.0
    %v1501 = vand.u32 %v135, 4294901760
    %1502 = vmatpush1.msra.mxu0 %v1501
    %1503 = vmatprep.subr.mxu0 0.0
    %v1504 = vand.u32 %v134, 4294901760
    %1505 = vmatpush1.msra.mxu0 %v1504
    %1506 = vmatprep.subr.mxu0 0.0
    %v1507 = vand.u32 %v133, 4294901760
    %1508 = vmatpush1.msra.mxu0 %v1507
    %1509 = vmatprep.subr.mxu0 0.0
    %v1510 = vand.u32 %v132, 4294901760
    %1511 = vmatpush1.msra.mxu0 %v1510
    %1512 = vmatprep.subr.mxu0 0.0
    %v1513 = vand.u32 %v131, 4294901760
    %1514 = vmatpush1.msra.mxu0 %v1513
    %1515 = vmatprep.subr.mxu0 0.0
    %v1516 = vand.u32 %v130, 4294901760
    %1517 = vmatpush1.msra.mxu0 %v1516
    %1518 = vmatprep.subr.mxu0 0.0
    %v1519 = vand.u32 %v129, 4294901760
    %1520 = vmatpush1.msra.mxu0 %v1519
    %1521 = vmatprep.subr.mxu0 0.0
    %v1522 = vand.u32 %v128, 4294901760
    %1523 = vmatpush1.msra.mxu0 %v1522
    %1524 = vmatprep.subr.mxu0 0.0
    %v1525 = vand.u32 %v127, 4294901760
    %1526 = vmatpush1.msra.mxu0 %v1525
    %1527 = vmatprep.subr.mxu0 0.0
    %v1528 = vand.u32 %v126, 4294901760
    %1529 = vmatpush1.msra.mxu0 %v1528
    %1530 = vmatprep.subr.mxu0 0.0
    %v1531 = vand.u32 %v125, 4294901760
    %1532 = vmatpush1.msra.mxu0 %v1531
    %1533 = vmatprep.subr.mxu0 0.0
    %v1534 = vand.u32 %v124, 4294901760
    %1535 = vmatpush1.msra.mxu0 %v1534
    %1536 = vmatprep.subr.mxu0 0.0
    %v1537 = vand.u32 %v123, 4294901760
    %1538 = vmatpush1.msra.mxu0 %v1537
    %1539 = vmatprep.subr.mxu0 0.0
    %1540 = vmatpush2.msra.mxu0 0.0
    %1541 = vmatprep.subr.mxu0 0.0
    %1542 = vmatpush2.msra.mxu0 0.0
    %1543 = vmatprep.subr.mxu0 0.0
    %1544 = vmatpush2.msra.mxu0 0.0
    %1545 = vmatprep.subr.mxu0 0.0
    %1546 = vmatpush2.msra.mxu0 0.0
    %1547 = vmatprep.subr.mxu0 0.0
    %1548 = vmatpush2.msra.mxu0 0.0
    %1549 = vmatprep.subr.mxu0 0.0
    %1550 = vmatpush2.msra.mxu0 0.0
    %1551 = vmatprep.subr.mxu0 0.0
    %1552 = vmatpush2.msra.mxu0 0.0
    %1553 = vmatprep.subr.mxu0 0.0
    %1554 = vmatpush2.msra.mxu0 0.0
    %1555 = vmatprep.subr.mxu0 0.0
    %1556 = vmatpush2.msra.mxu0 0.0
    %1557 = vmatprep.subr.mxu0 0.0
    %1558 = vmatpush2.msra.mxu0 0.0
    %1559 = vmatprep.subr.mxu0 0.0
    %1560 = vmatpush2.msra.mxu0 0.0
    %1561 = vmatprep.subr.mxu0 0.0
    %1562 = vmatpush2.msra.mxu0 0.0
    %1563 = vmatprep.subr.mxu0 0.0
    %1564 = vmatpush2.msra.mxu0 0.0
    %1565 = vmatprep.subr.mxu0 0.0
    %1566 = vmatpush2.msra.mxu0 0.0
    %1567 = vmatprep.subr.mxu0 0.0
    %1568 = vmatpush2.msra.mxu0 0.0
    %1569 = vmatprep.subr.mxu0 0.0
    %1570 = vmatpush2.msra.mxu0 0.0
    %1571 = vmatprep.mubr.f32.mxu0 0.0
    %v1572 = vand.u32 %v822, 4294901760
    %1573 = vmatmul.mubr.f32.gmra.mxu0 %v1572
    %v1574 = vpop.f32.mrf.mxu0
    %v1575 = vadd.f32 %v1470, %v1574
    %v1576 = vpop.f32.mrf.mxu0
    %1577 = vmatprep.mubr.f32.mxu0 0.0
    %v1578 = vand.u32 %v823, 4294901760
    %1579 = vmatmul.mubr.f32.gmra.mxu0 %v1578
    %v1580 = vpop.f32.mrf.mxu0
    %v1581 = vadd.f32 %v1476, %v1580
    %v1582 = vpop.f32.mrf.mxu0
    %1583 = vmatprep.mubr.f32.mxu0 0.0
    %v1584 = vand.u32 %v824, 4294901760
    %1585 = vmatmul.mubr.f32.gmra.mxu0 %v1584
    %v1586 = vpop.f32.mrf.mxu0
    %v1587 = vadd.f32 %v1482, %v1586
    %v1588 = vpop.f32.mrf.mxu0
    %1589 = vmatprep.mubr.f32.mxu0 0.0
    %v1590 = vand.u32 %v825, 4294901760
    %1591 = vmatmul.mubr.f32.gmra.mxu0 %v1590
    %v1592 = vpop.f32.mrf.mxu0
    %v1593 = vadd.f32 %v1488, %v1592
    %v1594 = vpop.f32.mrf.mxu0
    %1595 = vdwg.mxu0
    %v1596 = vmul.f32 %v801, %v1575
    %v1597 = vmul.f32 %v807, %v1581
    %v1598 = vmul.f32 %v813, %v1587
    %v1599 = vmul.f32 %v819, %v1593
    %v1600 = vld [vmem:[%s4] sm:$0xff]
    %v1601 = vld [vmem:[%s4 + $0x8] sm:$0xff]
    %v1602 = vld [vmem:[%s4 + $0x10] sm:$0xff]
    %v1603 = vld [vmem:[%s4 + $0x18] sm:$0xff]
    %1605 = vset.pattern.permute.xlu0 0
    %1606 = vperm.xlu0 %1605, %v1600
    %v1607 = vpop.permute.xlu0 %1606
    %1610 = vset.pattern.permute.xlu0 0
    %1611 = vperm.xlu0 %1610, %v1601
    %v1612 = vpop.permute.xlu0 %1611
    %1615 = vset.pattern.permute.xlu0 0
    %1616 = vperm.xlu0 %1615, %v1602
    %v1617 = vpop.permute.xlu0 %1616
    %1620 = vset.pattern.permute.xlu0 0
    %1621 = vperm.xlu0 %1620, %v1603
    %v1622 = vpop.permute.xlu0 %1621
    %v1624 = vmul.f32 %v1596, %v1607
    %v1625 = vmul.f32 %v1597, %v1612
    %v1626 = vmul.f32 %v1598, %v1617
    %v1627 = vmul.f32 %v1599, %v1622
    %v1628 = vadd.f32 %v1624, %v1625
    %v1629 = vadd.f32 %v1628, %v1626
    %v1630 = vadd.f32 %v1629, %v1627
    %v1631 = vrot.slane %v1630, 4
    %v1632 = vadd.f32 %v1630, %v1631
    %v1633 = vrot.slane %v1632, 2
    %v1634 = vadd.f32 %v1632, %v1633
    %v1635 = vrot.slane %v1634, 1
    %v1636 = vadd.f32 %v1634, %v1635
    %v1637 = vld [vmem:[#allocation2] sm:$0x1]
    %1639 = vset.pattern.permute.xlu0 0
    %1640 = vperm.xlu0 %1639, %v1637
    %v1641 = vpop.permute.xlu0 %1640
    %v1643 = vlaneseq
    %v1644 = vshrl.u32 %v1643, 7
    %v1645 = vsub.s32 0, %v1644
    %v1646 = vrot.slane %v1641, %v1645
    %v1647 = vadd.f32 %v1636, %v1646
    %1648 = vst [vmem:[#allocation6] sm:$0x1] %v1647
    // Predicated region
    $region30: #{tpu_custom_call.1} parent=1 // pred_check
      _
    $region31: #{tpu_custom_call.1} parent=1 // pred_check_branch
      %1650 = sbr.rel (0) target = $region33
    $region32: #{tpu_custom_call.1} parent=1 // pred_region
      %s1652 = ssub.s32 16, 16
      %1653 = vsyncadd [#allocation5], %s1652
      %s1655 = sshll.u32 [#allocation6], 4
      %s1656 = int_to_ptr.vmem [resolvable:$true] %s1655
      %1658 = dma.vmem_to_hbm [thread:$0]  %s1656, 16, %s6, [#allocation5]
    $region33: #{tpu_custom_call.1} parent=1 // pred_fallthru
      _
    // Predicated region
    $region34: #{tpu_custom_call.1} parent=1 // pred_check
      _
    $region35: #{tpu_custom_call.1} parent=1 // pred_check_branch
      %1660 = sbr.rel (0) target = $region37
    $region36: #{tpu_custom_call.1} parent=1 // pred_region
      %1661 = dma.done [#allocation5], 16
    $region37: #{tpu_custom_call.1} parent=1 // pred_fallthru
      _
    %1662 = vsyncpa [#allocation4], 1
    %1663 = vsyncpa [#allocation5], 1

</llo_original>
